<compile_context>
chip_gen: v7x
topology: tpu7x:2x2x1
jax: 0.10.0
libtpu: 0.0.40
codegen_flags: <defaults>
</compile_context>

<pallas_src>
import math
import functools

import jax
import jax.numpy as jnp
from jax import lax
from jax.experimental import pallas as pl
from jax.experimental.pallas import tpu as pltpu

M_C = 16            # conv channel count from the module (m_c = 16)
BN_EPS = 1e-5


def _round_up(n, m):
    return ((n + m - 1) // m) * m


@functools.lru_cache(maxsize=None)
def _vmem_cap_bytes():
    # Trace-time hardware query; fall back to the smallest (v7x) capacity.
    try:
        cap = int(getattr(pltpu.get_tpu_info(), "vmem_capacity_bytes", 0))
        if cap > 0:
            return cap
    except Exception:
        pass
    return 64 * 1024 * 1024


@functools.lru_cache(maxsize=None)
def _vmem_limit_bytes():
    # ~96 MiB scoped budget on 128 MiB parts (v5e/v6e), ~48 MiB on 64 MiB v7x.
    return int(min(_vmem_cap_bytes() * 3 // 4, 96 * 1024 * 1024))


@functools.lru_cache(maxsize=None)
def _block_rows():
    # 512-row tiles on 128 MiB parts, 256 on v7x (64 MiB).
    return 512 if _vmem_cap_bytes() >= (100 << 20) else 256


# ----------------------------- Pallas kernels -----------------------------

def _conv_proj_kernel(x_ref, w1_ref, b1_ref, sc_ref, sh_ref,
                      w2_ref, b2_ref, wih_ref, bih_ref, o_ref):
    # Fused: conv1 (dense) -> ReLU -> BN affine -> conv2 (dense) ->
    # packed layer-0 RNN input projection for BOTH directions ([xf|xb], bf16).
    y1 = jnp.dot(x_ref[...], w1_ref[...], preferred_element_type=jnp.float32)
    y1 = jnp.maximum(y1 + b1_ref[...], 0.0) * sc_ref[...] + sh_ref[...]
    y2 = jnp.dot(y1.astype(jnp.bfloat16), w2_ref[...],
                 preferred_element_type=jnp.float32) + b2_ref[...]
    o = jnp.dot(y2.astype(jnp.bfloat16), wih_ref[...],
                preferred_element_type=jnp.float32) + bih_ref[...]
    o_ref[...] = o.astype(o_ref.dtype)


def _dual_proj_kernel(hf_ref, hb_ref, wf_ref, wb_ref, b_ref, o_ref):
    # Layer >= 1 input projection.  hf / hb passed separately (no HBM concat);
    # output is the packed [xf_proj | xb_proj] slab.
    o = (jnp.dot(hf_ref[...], wf_ref[...], preferred_element_type=jnp.float32)
         + jnp.dot(hb_ref[...], wb_ref[...], preferred_element_type=jnp.float32)
         + b_ref[...])
    o_ref[...] = o.astype(o_ref.dtype)


def _fc_logsoftmax_kernel(hf_ref, hb_ref, wf_ref, wb_ref, b_ref, o_ref):
    # logits = [hf | hb] @ W_fc^T + b (split, no concat); padded output lanes
    # carry a -1e9 bias so exp() zeroes them.  LogSoftmax fused.
    logits = (jnp.dot(hf_ref[...], wf_ref[...], preferred_element_type=jnp.float32)
              + jnp.dot(hb_ref[...], wb_ref[...], preferred_element_type=jnp.float32)
              + b_ref[...])
    m = jnp.max(logits, axis=-1, keepdims=True)
    z = logits - m
    lse = jnp.log(jnp.sum(jnp.exp(z), axis=-1, keepdims=True))
    o_ref[...] = z - lse


def _bidir_rnn_kernel(x_ref, wblk_ref, of_ref, ob_ref, *, seq_len, hp, unroll):
    # x_ref: (T, bb, 2*hp) bf16 packed [xf_t | xb_t] (precomputed x@W_ih + b).
    # One block-diagonal (bb, 2hp) x (2hp, 2hp) matmul per step drives BOTH
    # directions (fwd consumes time i, bwd consumes time T-1-i).  Carry is f32.
    bb = x_ref.shape[1]
    wblk = wblk_ref[...]                                   # hoisted out of the loop
    lane = lax.broadcasted_iota(jnp.int32, (bb, 2 * hp), 1)
    fwd_lane = lane < hp                                   # hoisted (no per-iter bcast)

    def body(i, h):
        tb = seq_len - 1 - i
        hw = jnp.dot(h.astype(jnp.bfloat16), wblk,
                     preferred_element_type=jnp.float32)
        x_step = jnp.where(fwd_lane, x_ref[i], x_ref[tb]).astype(jnp.float32)
        h = jnp.maximum(hw + x_step, 0.0)
        # TODO(synk): buffer a chunk of steps in VMEM scratch and flush per
        # chunk to widen these half-slab stores (minor at these sizes).
        of_ref[i] = h[:, :hp].astype(of_ref.dtype)
        ob_ref[tb] = h[:, hp:].astype(ob_ref.dtype)
        return h

    h0 = jnp.zeros((bb, 2 * hp), jnp.float32)
    lax.fori_loop(0, seq_len, body, h0, unroll=unroll)


# ----------------------------- kernel wrappers -----------------------------

def _row_tiled(kernel, row_args, full_args, out_cols, out_dtype):
    """Run `kernel` tiled over rows; `full_args` (weights/bias) are whole arrays."""
    M = row_args[0].shape[0]
    bm = min(_block_rows(), _round_up(M, 16))
    in_specs, args = [], []
    for a in row_args:
        in_specs.append(pl.BlockSpec((bm, a.shape[1]), lambda i: (i, 0)))
        args.append(a)
    for a in full_args:
        # bind ndim at definition time (no late-binding lambdas)
        # TODO(synk): pipeline_mode=pl.Buffered(1) on these invariant operands
        # would shave VMEM on v7x; left at default buffering for portability.
        in_specs.append(pl.BlockSpec(a.shape, lambda i, nd=a.ndim: (0,) * nd))
        args.append(a)
    return pl.pallas_call(
        kernel,
        grid=(pl.cdiv(M, bm),),
        in_specs=in_specs,
        out_specs=pl.BlockSpec((bm, out_cols), lambda i: (i, 0)),
        out_shape=jax.ShapeDtypeStruct((M, out_cols), out_dtype),
        compiler_params=pltpu.CompilerParams(
            dimension_semantics=("parallel",),
            vmem_limit_bytes=_vmem_limit_bytes()),
    )(*args)


def _batch_block(B):
    # Prefer >= 2 grid programs with 8-row-aligned blocks so both v7x
    # TensorCores get work; fall back to the whole batch for tiny B.
    half = B // 2
    if B % 2 == 0 and half % 8 == 0:
        return half
    if B % 8 == 0 and B > 8:
        return 8
    return B


def _bidir_rnn(xpk, wblk, hp):
    # TODO(synk): for very long T also chunk the grid over T ("arbitrary" axis,
    # fwd chunks ascending / bwd chunks via a reversed index_map, h carried in
    # VMEM scratch) so whole-sequence residency is not required on v7x.
    T, B, _ = xpk.shape
    bb = _batch_block(B)
    kernel = functools.partial(_bidir_rnn_kernel, seq_len=T, hp=hp,
                               unroll=True if T <= 32 else 8)
    return pl.pallas_call(
        kernel,
        grid=(pl.cdiv(B, bb),),
        in_specs=[pl.BlockSpec((T, bb, 2 * hp), lambda b: (0, b, 0)),
                  pl.BlockSpec((2 * hp, 2 * hp), lambda b: (0, 0))],
        out_specs=(pl.BlockSpec((T, bb, hp), lambda b: (0, b, 0)),
                   pl.BlockSpec((T, bb, hp), lambda b: (0, b, 0))),
        out_shape=(jax.ShapeDtypeStruct((T, B, hp), jnp.bfloat16),
                   jax.ShapeDtypeStruct((T, B, hp), jnp.bfloat16)),
        compiler_params=pltpu.CompilerParams(
            dimension_semantics=("parallel",),
            vmem_limit_bytes=_vmem_limit_bytes()),
    )(xpk, wblk)


# --------------------- conv-as-dense weight expansion (JAX glue) ---------------------

def _conv1_dense_weight(conv1_w, F, W1, C):
    # Conv2d(1, C, k=(3,5), stride=(1,2), pad=(1,2)) as a (3F, C*W1) matrix.
    # rows: kh*F + f ; cols: c*W1 + w1
    kh = jnp.arange(3)[:, None, None, None]
    f = jnp.arange(F)[None, :, None, None]
    c = jnp.arange(C)[None, None, :, None]
    w1 = jnp.arange(W1)[None, None, None, :]
    kw = f - 2 * w1 + 2
    valid = (kw >= 0) & (kw < 5)
    kw_c = jnp.clip(kw, 0, 4)
    w = conv1_w[:, 0]                                  # (C, 3, 5)
    vals = jnp.where(valid, w[c, kh, kw_c], 0.0)       # (3, F, C, W1)
    return vals.reshape(3 * F, C * W1)


def _conv2_dense_weight(conv2_w, W1, W2, C):
    # Conv2d(C, C, k=(1,3), stride=(1,2), pad=(0,1)) as a (C*W1, C*W2) matrix.
    # rows: ci*W1 + w1 ; cols: co*W2 + w2   (= PyTorch permute(0,2,1,3) layout)
    ci = jnp.arange(C)[:, None, None, None]
    w1 = jnp.arange(W1)[None, :, None, None]
    co = jnp.arange(C)[None, None, :, None]
    w2 = jnp.arange(W2)[None, None, None, :]
    kw = w1 - 2 * w2 + 1
    valid = (kw >= 0) & (kw < 3)
    kw_c = jnp.clip(kw, 0, 2)
    w = conv2_w[:, :, 0]                               # (Cout, Cin, 3)
    vals = jnp.where(valid, w[co, ci, kw_c], 0.0)      # (Cin, W1, Cout, W2)
    return vals.reshape(C * W1, C * W2)


# ----------------------------- forward pass -----------------------------

def rnn_cnn_forward(x, params):
    B, T, F = x.shape
    C = M_C
    W1 = math.ceil(F / 2)
    W2 = math.ceil(W1 / 2)
    D = C * W2
    H = params["rnn"][0]["whh_f"].shape[0]
    num_output = params["fc_w"].shape[0]
    Hp = _round_up(H, 64)              # per-direction width; packed slab = 2*Hp lanes
    NOp = _round_up(num_output, 128)   # lane-dense log-softmax output

    # Three time taps per (t, b) row, time-major, so no later activation
    # transposes are needed (this is the only layout shuffle, 3x of raw x).
    xp = jnp.pad(x, ((0, 0), (1, 1), (0, 0)))
    taps = jnp.stack([xp[:, kh:kh + T, :] for kh in range(3)], axis=2)   # (B,T,3,F)
    xrows = (jnp.transpose(taps, (1, 0, 2, 3))
             .reshape(T * B, 3 * F).astype(jnp.bfloat16))                # rows = t*B + b

    # Dense-expanded conv weights (stride/padding + NCHW permute folded in), bf16.
    w1big = _conv1_dense_weight(params["conv1_w"], F, W1, C).astype(jnp.bfloat16)
    w2big = _conv2_dense_weight(params["conv2_w"], W1, W2, C).astype(jnp.bfloat16)
    b1 = jnp.repeat(params["conv1_b"], W1).reshape(1, C * W1)
    bn_scale = params["bn_gamma"] / jnp.sqrt(params["bn_var"] + BN_EPS)
    bn_shift = params["bn_beta"] - params["bn_mean"] * bn_scale
    sc = jnp.repeat(bn_scale, W1).reshape(1, C * W1)
    sh = jnp.repeat(bn_shift, W1).reshape(1, C * W1)
    b2 = jnp.repeat(params["conv2_b"], W2).reshape(1, D)
    # TODO(synk): nn.Dropout2d is train-mode channel dropout; eval-mode identity used.

    def packed_bias(layer):
        b = jnp.zeros((1, 2 * Hp), jnp.float32)
        return b.at[0, :H].set(layer["b_f"]).at[0, Hp:Hp + H].set(layer["b_b"])

    # Layer-0 RNN input projection fused into the conv kernel epilogue; one
    # (D, 2*Hp) weight produces the packed, lane-dense [xf | xb] slab in bf16.
    l0 = params["rnn"][0]
    wih0 = jnp.zeros((D, 2 * Hp), jnp.float32)
    wih0 = wih0.at[:, :H].set(l0["wih_f"].T).at[:, Hp:Hp + H].set(l0["wih_b"].T)
    xpk = _row_tiled(
        _conv_proj_kernel, [xrows],
        [w1big, b1, sc, sh, w2big, b2, wih0.astype(jnp.bfloat16), packed_bias(l0)],
        out_cols=2 * Hp, out_dtype=jnp.bfloat16)

    hf = hb = None
    for li, layer in enumerate(params["rnn"]):
        if li > 0:
            # Split wih into hf- / hb-feature halves so the previous layer's
            # outputs are consumed without materializing a concat in HBM.
            wf = jnp.zeros((Hp, 2 * Hp), jnp.float32)
            wf = (wf.at[:H, :H].set(layer["wih_f"][:, :H].T)
                    .at[:H, Hp:Hp + H].set(layer["wih_b"][:, :H].T))
            wb = jnp.zeros((Hp, 2 * Hp), jnp.float32)
            wb = (wb.at[:H, :H].set(layer["wih_f"][:, H:].T)
                    .at[:H, Hp:Hp + H].set(layer["wih_b"][:, H:].T))
            xpk = _row_tiled(
                _dual_proj_kernel, [hf, hb],
                [wf.astype(jnp.bfloat16), wb.astype(jnp.bfloat16),
                 packed_bias(layer)],
                out_cols=2 * Hp, out_dtype=jnp.bfloat16)

        # blockdiag(Whh_f^T, Whh_b^T): one MXU push per timestep for both dirs.
        wblk = jnp.zeros((2 * Hp, 2 * Hp), jnp.float32)
        wblk = (wblk.at[:H, :H].set(layer["whh_f"].T)
                    .at[Hp:Hp + H, Hp:Hp + H].set(layer["whh_b"].T))
        of, ob = _bidir_rnn(xpk.reshape(T, B, 2 * Hp),
                            wblk.astype(jnp.bfloat16), Hp)
        hf = of.reshape(T * B, Hp)                     # free (contiguous) reshapes
        hb = ob.reshape(T * B, Hp)

    # feature2label + LogSoftmax fused; hidden halves consumed without concat;
    # output padded to 128 lanes (padded logits biased to -1e9), sliced after.
    fcw = params["fc_w"]                               # (num_output, 2H)
    fcwf = (jnp.zeros((Hp, NOp), jnp.float32)
            .at[:H, :num_output].set(fcw[:, :H].T).astype(jnp.bfloat16))
    fcwb = (jnp.zeros((Hp, NOp), jnp.float32)
            .at[:H, :num_output].set(fcw[:, H:].T).astype(jnp.bfloat16))
    fcb = (jnp.full((1, NOp), -1e9, jnp.float32)
           .at[0, :num_output].set(params["fc_b"]))
    logp = _row_tiled(_fc_logsoftmax_kernel, [hf, hb], [fcwf, fcwb, fcb],
                      out_cols=NOp, out_dtype=jnp.float32)
    logp = logp[:, :num_output]
    return jnp.transpose(logp.reshape(T, B, num_output), (1, 0, 2))


# ----------------------------- pure-JAX reference -----------------------------

def _ref_forward(x, params):
    B, T, F = x.shape
    C = M_C
    W1 = math.ceil(F / 2)
    W2 = math.ceil(W1 / 2)
    xp = jnp.pad(x, ((0, 0), (1, 1), (2, 2)))
    w1 = params["conv1_w"][:, 0]
    acc = jnp.zeros((B, C, T, W1), jnp.float32)
    for kh in range(3):
        for kw in range(5):
            patch = xp[:, kh:kh + T, kw:kw + 2 * (W1 - 1) + 1:2]
            acc = acc + w1[None, :, kh, kw, None, None] * patch[:, None, :, :]
    y1 = jnp.maximum(acc + params["conv1_b"][None, :, None, None], 0.0)
    scale = params["bn_gamma"] / jnp.sqrt(params["bn_var"] + BN_EPS)
    shift = params["bn_beta"] - params["bn_mean"] * scale
    y1 = y1 * scale[None, :, None, None] + shift[None, :, None, None]
    y1p = jnp.pad(y1, ((0, 0), (0, 0), (0, 0), (1, 1)))
    acc2 = jnp.zeros((B, C, T, W2), jnp.float32)
    for kw in range(3):
        patch = y1p[:, :, :, kw:kw + 2 * (W2 - 1) + 1:2]
        acc2 = acc2 + jnp.einsum("oi,bitw->botw", params["conv2_w"][:, :, 0, kw], patch)
    y2 = acc2 + params["conv2_b"][None, :, None, None]
    h = jnp.transpose(y2, (0, 2, 1, 3)).reshape(B, T, C * W2)

    for layer in params["rnn"]:
        def run_dir(wih, whh, b, xs):
            hs = []
            hp = jnp.zeros((B, whh.shape[0]), jnp.float32)
            for t in range(T):
                hp = jnp.maximum(xs[:, t] @ wih.T + b + hp @ whh.T, 0.0)
                hs.append(hp)
            return jnp.stack(hs, axis=1)
        fwd = run_dir(layer["wih_f"], layer["whh_f"], layer["b_f"], h)
        bwd = run_dir(layer["wih_b"], layer["whh_b"], layer["b_b"], h[:, ::-1])[:, ::-1]
        h = jnp.concatenate([fwd, bwd], axis=-1)

    logits = h @ params["fc_w"].T + params["fc_b"]
    return jax.nn.log_softmax(logits, axis=-1)


# ----------------------------- parameter init -----------------------------

def init_params(key, feature_size, hidden_size, num_layers, num_output, m_c=M_C):
    keys = iter(jax.random.split(key, 128))

    def nrm(shape):
        return 0.01 * jax.random.normal(next(keys), shape, jnp.float32)

    p = {
        "conv1_w": nrm((m_c, 1, 3, 5)), "conv1_b": nrm((m_c,)),
        "bn_gamma": nrm((m_c,)), "bn_beta": nrm((m_c,)),
        "bn_mean": jnp.zeros((m_c,), jnp.float32),     # fresh BN running stats
        "bn_var": jnp.ones((m_c,), jnp.float32),
        "conv2_w": nrm((m_c, m_c, 1, 3)), "conv2_b": nrm((m_c,)),
    }
    rnn_in = m_c * math.ceil(feature_size / 4)
    layers = []
    for l in range(num_layers):
        din = rnn_in if l == 0 else 2 * hidden_size
        layers.append({
            "wih_f": nrm((hidden_size, din)),
            "whh_f": nrm((hidden_size, hidden_size)),
            "b_f": nrm((hidden_size,)) + nrm((hidden_size,)),   # b_ih + b_hh folded
            "wih_b": nrm((hidden_size, din)),
            "whh_b": nrm((hidden_size, hidden_size)),
            "b_b": nrm((hidden_size,)) + nrm((hidden_size,)),
        })
    p["rnn"] = layers
    p["fc_w"] = nrm((num_output, 2 * hidden_size))
    p["fc_b"] = nrm((num_output,))
    return p


# ----------------------------- main -----------------------------

if __name__ == "__main__":
    B, T, F = 2, 8, 16          # batch, seq len, feature_size
    hidden_size, num_layers, num_output = 32, 2, 8

    key = jax.random.PRNGKey(0)
    kp, kx = jax.random.split(key)
    params = init_params(kp, F, hidden_size, num_layers, num_output)
    x = jax.random.normal(kx, (B, T, F), jnp.float32)

    out = jax.jit(rnn_cnn_forward)(x, params)
    out = jax.block_until_ready(out)

    assert out.shape == (B, T, num_output), out.shape
    assert bool(jnp.all(jnp.isfinite(out)))
    # log-softmax rows must exponentiate-sum to 1
    assert bool(jnp.allclose(jnp.exp(out).sum(-1), 1.0, atol=1e-3))

    # numerical check against a pure-JAX f32 reference (bf16 matmuls => loose tol)
    ref = _ref_forward(x, params)
    err = float(jnp.max(jnp.abs(out - ref)))
    assert err < 2e-3, f"max |kernel - reference| = {err}"
    print("KERNEL_OK")
</pallas_src>

<mosaic_0001>
module attributes {stable_mosaic.version = 11 : i64} {
  func.func @_conv_proj_kernel(%arg0: i32, %arg1: memref<16x48xbf16, #tpu.memory_space<vmem>>, %arg2: memref<48x128xbf16, #tpu.memory_space<vmem>>, %arg3: memref<1x128xf32, #tpu.memory_space<vmem>>, %arg4: memref<1x128xf32, #tpu.memory_space<vmem>>, %arg5: memref<1x128xf32, #tpu.memory_space<vmem>>, %arg6: memref<128x64xbf16, #tpu.memory_space<vmem>>, %arg7: memref<1x64xf32, #tpu.memory_space<vmem>>, %arg8: memref<64x128xbf16, #tpu.memory_space<vmem>>, %arg9: memref<1x128xf32, #tpu.memory_space<vmem>>, %arg10: memref<16x128xbf16, #tpu.memory_space<vmem>>) attributes {dimension_semantics = [#tpu.dimension_semantics<parallel>], iteration_bounds = array<i64: 1>, scalar_prefetch = 0 : i64, scratch_operands = 0 : i64, tpu.core_type = #tpu.core_type<tc>, window_params = [{transform_indices = @transform_0, window_bounds = array<i64: 16, 48>}, {pipeline_mode = #tpu.pipeline_mode<synchronous>, transform_indices = @transform_1, window_bounds = array<i64: 48, 128>}, {pipeline_mode = #tpu.pipeline_mode<synchronous>, transform_indices = @transform_2, window_bounds = array<i64: 1, 128>}, {pipeline_mode = #tpu.pipeline_mode<synchronous>, transform_indices = @transform_3, window_bounds = array<i64: 1, 128>}, {pipeline_mode = #tpu.pipeline_mode<synchronous>, transform_indices = @transform_4, window_bounds = array<i64: 1, 128>}, {pipeline_mode = #tpu.pipeline_mode<synchronous>, transform_indices = @transform_5, window_bounds = array<i64: 128, 64>}, {pipeline_mode = #tpu.pipeline_mode<synchronous>, transform_indices = @transform_6, window_bounds = array<i64: 1, 64>}, {pipeline_mode = #tpu.pipeline_mode<synchronous>, transform_indices = @transform_7, window_bounds = array<i64: 64, 128>}, {pipeline_mode = #tpu.pipeline_mode<synchronous>, transform_indices = @transform_8, window_bounds = array<i64: 1, 128>}, {transform_indices = @transform_9, window_bounds = array<i64: 16, 128>}]} {
    %c0 = arith.constant 0 : index
    %c0_0 = arith.constant 0 : index
    %0 = vector.load %arg1[%c0, %c0_0] : memref<16x48xbf16, #tpu.memory_space<vmem>>, vector<16x48xbf16>
    %c0_1 = arith.constant 0 : index
    %c0_2 = arith.constant 0 : index
    %1 = vector.load %arg2[%c0_1, %c0_2] : memref<48x128xbf16, #tpu.memory_space<vmem>>, vector<48x128xbf16>
    %cst = arith.constant dense<0.000000e+00> : vector<16x128xf32>
    %2 = tpu.matmul %0, %1, %cst {dimension_numbers = #tpu.dot_dimension_numbers<[1], [0], [0], [1], [0, 0, 1, 1], [], []>} : vector<16x48xbf16>, vector<48x128xbf16>, vector<16x128xf32> -> vector<16x128xf32>
    %c0_3 = arith.constant 0 : index
    %c0_4 = arith.constant 0 : index
    %3 = vector.load %arg3[%c0_3, %c0_4] : memref<1x128xf32, #tpu.memory_space<vmem>>, vector<1x128xf32>
    %4 = vector.broadcast %3 : vector<1x128xf32> to vector<16x128xf32>
    %5 = arith.addf %2, %4 : vector<16x128xf32>
    %cst_5 = arith.constant 0.000000e+00 : f32
    %6 = vector.broadcast %cst_5 : f32 to vector<16x128xf32>
    %7 = arith.maximumf %5, %6 : vector<16x128xf32>
    %c0_6 = arith.constant 0 : index
    %c0_7 = arith.constant 0 : index
    %8 = vector.load %arg4[%c0_6, %c0_7] : memref<1x128xf32, #tpu.memory_space<vmem>>, vector<1x128xf32>
    %9 = vector.broadcast %8 : vector<1x128xf32> to vector<16x128xf32>
    %10 = arith.mulf %7, %9 : vector<16x128xf32>
    %c0_8 = arith.constant 0 : index
    %c0_9 = arith.constant 0 : index
    %11 = vector.load %arg5[%c0_8, %c0_9] : memref<1x128xf32, #tpu.memory_space<vmem>>, vector<1x128xf32>
    %12 = vector.broadcast %11 : vector<1x128xf32> to vector<16x128xf32>
    %13 = arith.addf %10, %12 : vector<16x128xf32>
    %14 = arith.truncf %13 : vector<16x128xf32> to vector<16x128xbf16>
    %c0_10 = arith.constant 0 : index
    %c0_11 = arith.constant 0 : index
    %15 = vector.load %arg6[%c0_10, %c0_11] : memref<128x64xbf16, #tpu.memory_space<vmem>>, vector<128x64xbf16>
    %cst_12 = arith.constant dense<0.000000e+00> : vector<16x64xf32>
    %16 = tpu.matmul %14, %15, %cst_12 {dimension_numbers = #tpu.dot_dimension_numbers<[1], [0], [0], [1], [0, 0, 1, 1], [], []>} : vector<16x128xbf16>, vector<128x64xbf16>, vector<16x64xf32> -> vector<16x64xf32>
    %c0_13 = arith.constant 0 : index
    %c0_14 = arith.constant 0 : index
    %17 = vector.load %arg7[%c0_13, %c0_14] : memref<1x64xf32, #tpu.memory_space<vmem>>, vector<1x64xf32>
    %18 = vector.broadcast %17 : vector<1x64xf32> to vector<16x64xf32>
    %19 = arith.addf %16, %18 : vector<16x64xf32>
    %20 = arith.truncf %19 : vector<16x64xf32> to vector<16x64xbf16>
    %c0_15 = arith.constant 0 : index
    %c0_16 = arith.constant 0 : index
    %21 = vector.load %arg8[%c0_15, %c0_16] : memref<64x128xbf16, #tpu.memory_space<vmem>>, vector<64x128xbf16>
    %cst_17 = arith.constant dense<0.000000e+00> : vector<16x128xf32>
    %22 = tpu.matmul %20, %21, %cst_17 {dimension_numbers = #tpu.dot_dimension_numbers<[1], [0], [0], [1], [0, 0, 1, 1], [], []>} : vector<16x64xbf16>, vector<64x128xbf16>, vector<16x128xf32> -> vector<16x128xf32>
    %c0_18 = arith.constant 0 : index
    %c0_19 = arith.constant 0 : index
    %23 = vector.load %arg9[%c0_18, %c0_19] : memref<1x128xf32, #tpu.memory_space<vmem>>, vector<1x128xf32>
    %24 = vector.broadcast %23 : vector<1x128xf32> to vector<16x128xf32>
    %25 = arith.addf %22, %24 : vector<16x128xf32>
    %26 = arith.truncf %25 : vector<16x128xf32> to vector<16x128xbf16>
    %c0_20 = arith.constant 0 : index
    %c0_21 = arith.constant 0 : index
    %27 = vector.load %arg10[%c0_20, %c0_21] : memref<16x128xbf16, #tpu.memory_space<vmem>>, vector<16x128xbf16>
    tpu.vector_store %arg10[%c0_20, %c0_21], %26 {strides = array<i32>} : memref<16x128xbf16, #tpu.memory_space<vmem>>, vector<16x128xbf16>,
    return
  }
  func.func @transform_0(%arg0: i32) -> (i32, i32) {
    %c0_i32 = arith.constant 0 : i32
    %c0_i32_0 = arith.constant 0 : i32
    return %arg0, %c0_i32 : i32, i32
  }
  func.func @transform_1(%arg0: i32) -> (i32, i32) {
    %c0_i32 = arith.constant 0 : i32
    %c0_i32_0 = arith.constant 0 : i32
    %c0_i32_1 = arith.constant 0 : i32
    return %c0_i32, %c0_i32_0 : i32, i32
  }
  func.func @transform_2(%arg0: i32) -> (i32, i32) {
    %c0_i32 = arith.constant 0 : i32
    %c0_i32_0 = arith.constant 0 : i32
    %c0_i32_1 = arith.constant 0 : i32
    return %c0_i32, %c0_i32_0 : i32, i32
  }
  func.func @transform_3(%arg0: i32) -> (i32, i32) {
    %c0_i32 = arith.constant 0 : i32
    %c0_i32_0 = arith.constant 0 : i32
    %c0_i32_1 = arith.constant 0 : i32
    return %c0_i32, %c0_i32_0 : i32, i32
  }
  func.func @transform_4(%arg0: i32) -> (i32, i32) {
    %c0_i32 = arith.constant 0 : i32
    %c0_i32_0 = arith.constant 0 : i32
    %c0_i32_1 = arith.constant 0 : i32
    return %c0_i32, %c0_i32_0 : i32, i32
  }
  func.func @transform_5(%arg0: i32) -> (i32, i32) {
    %c0_i32 = arith.constant 0 : i32
    %c0_i32_0 = arith.constant 0 : i32
    %c0_i32_1 = arith.constant 0 : i32
    return %c0_i32, %c0_i32_0 : i32, i32
  }
  func.func @transform_6(%arg0: i32) -> (i32, i32) {
    %c0_i32 = arith.constant 0 : i32
    %c0_i32_0 = arith.constant 0 : i32
    %c0_i32_1 = arith.constant 0 : i32
    return %c0_i32, %c0_i32_0 : i32, i32
  }
  func.func @transform_7(%arg0: i32) -> (i32, i32) {
    %c0_i32 = arith.constant 0 : i32
    %c0_i32_0 = arith.constant 0 : i32
    %c0_i32_1 = arith.constant 0 : i32
    return %c0_i32, %c0_i32_0 : i32, i32
  }
  func.func @transform_8(%arg0: i32) -> (i32, i32) {
    %c0_i32 = arith.constant 0 : i32
    %c0_i32_0 = arith.constant 0 : i32
    %c0_i32_1 = arith.constant 0 : i32
    return %c0_i32, %c0_i32_0 : i32, i32
  }
  func.func @transform_9(%arg0: i32) -> (i32, i32) {
    %c0_i32 = arith.constant 0 : i32
    %c0_i32_0 = arith.constant 0 : i32
    return %arg0, %c0_i32 : i32, i32
  }
}

module attributes {stable_mosaic.version = 11 : i64} {
  func.func @_bidir_rnn_kernel(%arg0: i32, %arg1: memref<8x2x128xbf16, #tpu.memory_space<vmem>>, %arg2: memref<128x128xbf16, #tpu.memory_space<vmem>>, %arg3: memref<8x2x64xbf16, #tpu.memory_space<vmem>>, %arg4: memref<8x2x64xbf16, #tpu.memory_space<vmem>>) attributes {dimension_semantics = [#tpu.dimension_semantics<parallel>], iteration_bounds = array<i64: 1>, scalar_prefetch = 0 : i64, scratch_operands = 0 : i64, tpu.core_type = #tpu.core_type<tc>, window_params = [{transform_indices = @transform_0, window_bounds = array<i64: 8, 2, 128>}, {pipeline_mode = #tpu.pipeline_mode<synchronous>, transform_indices = @transform_1, window_bounds = array<i64: 128, 128>}, {transform_indices = @transform_2, window_bounds = array<i64: 8, 2, 64>}, {transform_indices = @transform_3, window_bounds = array<i64: 8, 2, 64>}]} {
    %c0 = arith.constant 0 : index
    %c0_0 = arith.constant 0 : index
    %0 = vector.load %arg2[%c0, %c0_0] : memref<128x128xbf16, #tpu.memory_space<vmem>>, vector<128x128xbf16>
    %1 = tpu.iota {dimensions = array<i32: 1>} : vector<2x128xi32>
    %c64_i32 = arith.constant 64 : i32
    %2 = vector.broadcast %c64_i32 : i32 to vector<2x128xi32>
    %3 = arith.cmpi slt, %1, %2 : vector<2x128xi32>
    %cst = arith.constant 0.000000e+00 : f32
    %4 = vector.broadcast %cst : f32 to vector<2x128xf32>
    %c0_i32 = arith.constant 0 : i32
    %c7_i32 = arith.constant 7 : i32
    %5 = arith.subi %c7_i32, %c0_i32 : i32
    %6 = arith.truncf %4 : vector<2x128xf32> to vector<2x128xbf16>
    %cst_1 = arith.constant dense<0.000000e+00> : vector<2x128xf32>
    %7 = tpu.matmul %6, %0, %cst_1 {dimension_numbers = #tpu.dot_dimension_numbers<[1], [0], [0], [1], [0, 0, 1, 1], [], []>} : vector<2x128xbf16>, vector<128x128xbf16>, vector<2x128xf32> -> vector<2x128xf32>
    %8 = arith.index_cast %c0_i32 : i32 to index
    %c0_2 = arith.constant 0 : index
    %c0_3 = arith.constant 0 : index
    %9 = vector.load %arg1[%8, %c0_2, %c0_3] : memref<8x2x128xbf16, #tpu.memory_space<vmem>>, vector<1x2x128xbf16>
    %10 = vector.shape_cast %9 : vector<1x2x128xbf16> to vector<2x128xbf16>
    %11 = arith.index_cast %5 : i32 to index
    %c0_4 = arith.constant 0 : index
    %c0_5 = arith.constant 0 : index
    %12 = vector.load %arg1[%11, %c0_4, %c0_5] : memref<8x2x128xbf16, #tpu.memory_space<vmem>>, vector<1x2x128xbf16>
    %13 = vector.shape_cast %12 : vector<1x2x128xbf16> to vector<2x128xbf16>
    %14 = arith.select %3, %10, %13 : vector<2x128xi1>, vector<2x128xbf16>
    %15 = arith.extf %14 : vector<2x128xbf16> to vector<2x128xf32>
    %16 = arith.addf %7, %15 : vector<2x128xf32>
    %cst_6 = arith.constant 0.000000e+00 : f32
    %17 = vector.broadcast %cst_6 : f32 to vector<2x128xf32>
    %18 = arith.maximumf %16, %17 : vector<2x128xf32>
    %19 = vector.extract_strided_slice %18 {offsets = [0, 0], sizes = [2, 64], strides = [1, 1]} : vector<2x128xf32> to vector<2x64xf32>
    %20 = arith.truncf %19 : vector<2x64xf32> to vector<2x64xbf16>
    %21 = arith.index_cast %c0_i32 : i32 to index
    %c0_7 = arith.constant 0 : index
    %c0_8 = arith.constant 0 : index
    %22 = vector.load %arg3[%21, %c0_7, %c0_8] : memref<8x2x64xbf16, #tpu.memory_space<vmem>>, vector<1x2x64xbf16>
    %23 = vector.shape_cast %22 : vector<1x2x64xbf16> to vector<2x64xbf16>
    %24 = vector.shape_cast %20 : vector<2x64xbf16> to vector<1x2x64xbf16>
    tpu.vector_store %arg3[%21, %c0_7, %c0_8], %24 {strides = array<i32>} : memref<8x2x64xbf16, #tpu.memory_space<vmem>>, vector<1x2x64xbf16>,
    %25 = vector.extract_strided_slice %18 {offsets = [0, 64], sizes = [2, 64], strides = [1, 1]} : vector<2x128xf32> to vector<2x64xf32>
    %26 = arith.truncf %25 : vector<2x64xf32> to vector<2x64xbf16>
    %27 = arith.index_cast %5 : i32 to index
    %c0_9 = arith.constant 0 : index
    %c0_10 = arith.constant 0 : index
    %28 = vector.load %arg4[%27, %c0_9, %c0_10] : memref<8x2x64xbf16, #tpu.memory_space<vmem>>, vector<1x2x64xbf16>
    %29 = vector.shape_cast %28 : vector<1x2x64xbf16> to vector<2x64xbf16>
    %30 = vector.shape_cast %26 : vector<2x64xbf16> to vector<1x2x64xbf16>
    tpu.vector_store %arg4[%27, %c0_9, %c0_10], %30 {strides = array<i32>} : memref<8x2x64xbf16, #tpu.memory_space<vmem>>, vector<1x2x64xbf16>,
    %c1_i32 = arith.constant 1 : i32
    %c7_i32_11 = arith.constant 7 : i32
    %31 = arith.subi %c7_i32_11, %c1_i32 : i32
    %32 = arith.truncf %18 : vector<2x128xf32> to vector<2x128xbf16>
    %cst_12 = arith.constant dense<0.000000e+00> : vector<2x128xf32>
    %33 = tpu.matmul %32, %0, %cst_12 {dimension_numbers = #tpu.dot_dimension_numbers<[1], [0], [0], [1], [0, 0, 1, 1], [], []>} : vector<2x128xbf16>, vector<128x128xbf16>, vector<2x128xf32> -> vector<2x128xf32>
    %34 = arith.index_cast %c1_i32 : i32 to index
    %c0_13 = arith.constant 0 : index
    %c0_14 = arith.constant 0 : index
    %35 = vector.load %arg1[%34, %c0_13, %c0_14] : memref<8x2x128xbf16, #tpu.memory_space<vmem>>, vector<1x2x128xbf16>
    %36 = vector.shape_cast %35 : vector<1x2x128xbf16> to vector<2x128xbf16>
    %37 = arith.index_cast %31 : i32 to index
    %c0_15 = arith.constant 0 : index
    %c0_16 = arith.constant 0 : index
    %38 = vector.load %arg1[%37, %c0_15, %c0_16] : memref<8x2x128xbf16, #tpu.memory_space<vmem>>, vector<1x2x128xbf16>
    %39 = vector.shape_cast %38 : vector<1x2x128xbf16> to vector<2x128xbf16>
    %40 = arith.select %3, %36, %39 : vector<2x128xi1>, vector<2x128xbf16>
    %41 = arith.extf %40 : vector<2x128xbf16> to vector<2x128xf32>
    %42 = arith.addf %33, %41 : vector<2x128xf32>
    %cst_17 = arith.constant 0.000000e+00 : f32
    %43 = vector.broadcast %cst_17 : f32 to vector<2x128xf32>
    %44 = arith.maximumf %42, %43 : vector<2x128xf32>
    %45 = vector.extract_strided_slice %44 {offsets = [0, 0], sizes = [2, 64], strides = [1, 1]} : vector<2x128xf32> to vector<2x64xf32>
    %46 = arith.truncf %45 : vector<2x64xf32> to vector<2x64xbf16>
    %47 = arith.index_cast %c1_i32 : i32 to index
    %c0_18 = arith.constant 0 : index
    %c0_19 = arith.constant 0 : index
    %48 = vector.load %arg3[%47, %c0_18, %c0_19] : memref<8x2x64xbf16, #tpu.memory_space<vmem>>, vector<1x2x64xbf16>
    %49 = vector.shape_cast %48 : vector<1x2x64xbf16> to vector<2x64xbf16>
    %50 = vector.shape_cast %46 : vector<2x64xbf16> to vector<1x2x64xbf16>
    tpu.vector_store %arg3[%47, %c0_18, %c0_19], %50 {strides = array<i32>} : memref<8x2x64xbf16, #tpu.memory_space<vmem>>, vector<1x2x64xbf16>,
    %51 = vector.extract_strided_slice %44 {offsets = [0, 64], sizes = [2, 64], strides = [1, 1]} : vector<2x128xf32> to vector<2x64xf32>
    %52 = arith.truncf %51 : vector<2x64xf32> to vector<2x64xbf16>
    %53 = arith.index_cast %31 : i32 to index
    %c0_20 = arith.constant 0 : index
    %c0_21 = arith.constant 0 : index
    %54 = vector.load %arg4[%53, %c0_20, %c0_21] : memref<8x2x64xbf16, #tpu.memory_space<vmem>>, vector<1x2x64xbf16>
    %55 = vector.shape_cast %54 : vector<1x2x64xbf16> to vector<2x64xbf16>
    %56 = vector.shape_cast %52 : vector<2x64xbf16> to vector<1x2x64xbf16>
    tpu.vector_store %arg4[%53, %c0_20, %c0_21], %56 {strides = array<i32>} : memref<8x2x64xbf16, #tpu.memory_space<vmem>>, vector<1x2x64xbf16>,
    %c2_i32 = arith.constant 2 : i32
    %c7_i32_22 = arith.constant 7 : i32
    %57 = arith.subi %c7_i32_22, %c2_i32 : i32
    %58 = arith.truncf %44 : vector<2x128xf32> to vector<2x128xbf16>
    %cst_23 = arith.constant dense<0.000000e+00> : vector<2x128xf32>
    %59 = tpu.matmul %58, %0, %cst_23 {dimension_numbers = #tpu.dot_dimension_numbers<[1], [0], [0], [1], [0, 0, 1, 1], [], []>} : vector<2x128xbf16>, vector<128x128xbf16>, vector<2x128xf32> -> vector<2x128xf32>
    %60 = arith.index_cast %c2_i32 : i32 to index
    %c0_24 = arith.constant 0 : index
    %c0_25 = arith.constant 0 : index
    %61 = vector.load %arg1[%60, %c0_24, %c0_25] : memref<8x2x128xbf16, #tpu.memory_space<vmem>>, vector<1x2x128xbf16>
    %62 = vector.shape_cast %61 : vector<1x2x128xbf16> to vector<2x128xbf16>
    %63 = arith.index_cast %57 : i32 to index
    %c0_26 = arith.constant 0 : index
    %c0_27 = arith.constant 0 : index
    %64 = vector.load %arg1[%63, %c0_26, %c0_27] : memref<8x2x128xbf16, #tpu.memory_space<vmem>>, vector<1x2x128xbf16>
    %65 = vector.shape_cast %64 : vector<1x2x128xbf16> to vector<2x128xbf16>
    %66 = arith.select %3, %62, %65 : vector<2x128xi1>, vector<2x128xbf16>
    %67 = arith.extf %66 : vector<2x128xbf16> to vector<2x128xf32>
    %68 = arith.addf %59, %67 : vector<2x128xf32>
    %cst_28 = arith.constant 0.000000e+00 : f32
    %69 = vector.broadcast %cst_28 : f32 to vector<2x128xf32>
    %70 = arith.maximumf %68, %69 : vector<2x128xf32>
    %71 = vector.extract_strided_slice %70 {offsets = [0, 0], sizes = [2, 64], strides = [1, 1]} : vector<2x128xf32> to vector<2x64xf32>
    %72 = arith.truncf %71 : vector<2x64xf32> to vector<2x64xbf16>
    %73 = arith.index_cast %c2_i32 : i32 to index
    %c0_29 = arith.constant 0 : index
    %c0_30 = arith.constant 0 : index
    %74 = vector.load %arg3[%73, %c0_29, %c0_30] : memref<8x2x64xbf16, #tpu.memory_space<vmem>>, vector<1x2x64xbf16>
    %75 = vector.shape_cast %74 : vector<1x2x64xbf16> to vector<2x64xbf16>
    %76 = vector.shape_cast %72 : vector<2x64xbf16> to vector<1x2x64xbf16>
    tpu.vector_store %arg3[%73, %c0_29, %c0_30], %76 {strides = array<i32>} : memref<8x2x64xbf16, #tpu.memory_space<vmem>>, vector<1x2x64xbf16>,
    %77 = vector.extract_strided_slice %70 {offsets = [0, 64], sizes = [2, 64], strides = [1, 1]} : vector<2x128xf32> to vector<2x64xf32>
    %78 = arith.truncf %77 : vector<2x64xf32> to vector<2x64xbf16>
    %79 = arith.index_cast %57 : i32 to index
    %c0_31 = arith.constant 0 : index
    %c0_32 = arith.constant 0 : index
    %80 = vector.load %arg4[%79, %c0_31, %c0_32] : memref<8x2x64xbf16, #tpu.memory_space<vmem>>, vector<1x2x64xbf16>
    %81 = vector.shape_cast %80 : vector<1x2x64xbf16> to vector<2x64xbf16>
    %82 = vector.shape_cast %78 : vector<2x64xbf16> to vector<1x2x64xbf16>
    tpu.vector_store %arg4[%79, %c0_31, %c0_32], %82 {strides = array<i32>} : memref<8x2x64xbf16, #tpu.memory_space<vmem>>, vector<1x2x64xbf16>,
    %c3_i32 = arith.constant 3 : i32
    %c7_i32_33 = arith.constant 7 : i32
    %83 = arith.subi %c7_i32_33, %c3_i32 : i32
    %84 = arith.truncf %70 : vector<2x128xf32> to vector<2x128xbf16>
    %cst_34 = arith.constant dense<0.000000e+00> : vector<2x128xf32>
    %85 = tpu.matmul %84, %0, %cst_34 {dimension_numbers = #tpu.dot_dimension_numbers<[1], [0], [0], [1], [0, 0, 1, 1], [], []>} : vector<2x128xbf16>, vector<128x128xbf16>, vector<2x128xf32> -> vector<2x128xf32>
    %86 = arith.index_cast %c3_i32 : i32 to index
    %c0_35 = arith.constant 0 : index
    %c0_36 = arith.constant 0 : index
    %87 = vector.load %arg1[%86, %c0_35, %c0_36] : memref<8x2x128xbf16, #tpu.memory_space<vmem>>, vector<1x2x128xbf16>
    %88 = vector.shape_cast %87 : vector<1x2x128xbf16> to vector<2x128xbf16>
    %89 = arith.index_cast %83 : i32 to index
    %c0_37 = arith.constant 0 : index
    %c0_38 = arith.constant 0 : index
    %90 = vector.load %arg1[%89, %c0_37, %c0_38] : memref<8x2x128xbf16, #tpu.memory_space<vmem>>, vector<1x2x128xbf16>
    %91 = vector.shape_cast %90 : vector<1x2x128xbf16> to vector<2x128xbf16>
    %92 = arith.select %3, %88, %91 : vector<2x128xi1>, vector<2x128xbf16>
    %93 = arith.extf %92 : vector<2x128xbf16> to vector<2x128xf32>
    %94 = arith.addf %85, %93 : vector<2x128xf32>
    %cst_39 = arith.constant 0.000000e+00 : f32
    %95 = vector.broadcast %cst_39 : f32 to vector<2x128xf32>
    %96 = arith.maximumf %94, %95 : vector<2x128xf32>
    %97 = vector.extract_strided_slice %96 {offsets = [0, 0], sizes = [2, 64], strides = [1, 1]} : vector<2x128xf32> to vector<2x64xf32>
    %98 = arith.truncf %97 : vector<2x64xf32> to vector<2x64xbf16>
    %99 = arith.index_cast %c3_i32 : i32 to index
    %c0_40 = arith.constant 0 : index
    %c0_41 = arith.constant 0 : index
    %100 = vector.load %arg3[%99, %c0_40, %c0_41] : memref<8x2x64xbf16, #tpu.memory_space<vmem>>, vector<1x2x64xbf16>
    %101 = vector.shape_cast %100 : vector<1x2x64xbf16> to vector<2x64xbf16>
    %102 = vector.shape_cast %98 : vector<2x64xbf16> to vector<1x2x64xbf16>
    tpu.vector_store %arg3[%99, %c0_40, %c0_41], %102 {strides = array<i32>} : memref<8x2x64xbf16, #tpu.memory_space<vmem>>, vector<1x2x64xbf16>,
    %103 = vector.extract_strided_slice %96 {offsets = [0, 64], sizes = [2, 64], strides = [1, 1]} : vector<2x128xf32> to vector<2x64xf32>
    %104 = arith.truncf %103 : vector<2x64xf32> to vector<2x64xbf16>
    %105 = arith.index_cast %83 : i32 to index
    %c0_42 = arith.constant 0 : index
    %c0_43 = arith.constant 0 : index
    %106 = vector.load %arg4[%105, %c0_42, %c0_43] : memref<8x2x64xbf16, #tpu.memory_space<vmem>>, vector<1x2x64xbf16>
    %107 = vector.shape_cast %106 : vector<1x2x64xbf16> to vector<2x64xbf16>
    %108 = vector.shape_cast %104 : vector<2x64xbf16> to vector<1x2x64xbf16>
    tpu.vector_store %arg4[%105, %c0_42, %c0_43], %108 {strides = array<i32>} : memref<8x2x64xbf16, #tpu.memory_space<vmem>>, vector<1x2x64xbf16>,
    %c4_i32 = arith.constant 4 : i32
    %c7_i32_44 = arith.constant 7 : i32
    %109 = arith.subi %c7_i32_44, %c4_i32 : i32
    %110 = arith.truncf %96 : vector<2x128xf32> to vector<2x128xbf16>
    %cst_45 = arith.constant dense<0.000000e+00> : vector<2x128xf32>
    %111 = tpu.matmul %110, %0, %cst_45 {dimension_numbers = #tpu.dot_dimension_numbers<[1], [0], [0], [1], [0, 0, 1, 1], [], []>} : vector<2x128xbf16>, vector<128x128xbf16>, vector<2x128xf32> -> vector<2x128xf32>
    %112 = arith.index_cast %c4_i32 : i32 to index
    %c0_46 = arith.constant 0 : index
    %c0_47 = arith.constant 0 : index
    %113 = vector.load %arg1[%112, %c0_46, %c0_47] : memref<8x2x128xbf16, #tpu.memory_space<vmem>>, vector<1x2x128xbf16>
    %114 = vector.shape_cast %113 : vector<1x2x128xbf16> to vector<2x128xbf16>
    %115 = arith.index_cast %109 : i32 to index
    %c0_48 = arith.constant 0 : index
    %c0_49 = arith.constant 0 : index
    %116 = vector.load %arg1[%115, %c0_48, %c0_49] : memref<8x2x128xbf16, #tpu.memory_space<vmem>>, vector<1x2x128xbf16>
    %117 = vector.shape_cast %116 : vector<1x2x128xbf16> to vector<2x128xbf16>
    %118 = arith.select %3, %114, %117 : vector<2x128xi1>, vector<2x128xbf16>
    %119 = arith.extf %118 : vector<2x128xbf16> to vector<2x128xf32>
    %120 = arith.addf %111, %119 : vector<2x128xf32>
    %cst_50 = arith.constant 0.000000e+00 : f32
    %121 = vector.broadcast %cst_50 : f32 to vector<2x128xf32>
    %122 = arith.maximumf %120, %121 : vector<2x128xf32>
    %123 = vector.extract_strided_slice %122 {offsets = [0, 0], sizes = [2, 64], strides = [1, 1]} : vector<2x128xf32> to vector<2x64xf32>
    %124 = arith.truncf %123 : vector<2x64xf32> to vector<2x64xbf16>
    %125 = arith.index_cast %c4_i32 : i32 to index
    %c0_51 = arith.constant 0 : index
    %c0_52 = arith.constant 0 : index
    %126 = vector.load %arg3[%125, %c0_51, %c0_52] : memref<8x2x64xbf16, #tpu.memory_space<vmem>>, vector<1x2x64xbf16>
    %127 = vector.shape_cast %126 : vector<1x2x64xbf16> to vector<2x64xbf16>
    %128 = vector.shape_cast %124 : vector<2x64xbf16> to vector<1x2x64xbf16>
    tpu.vector_store %arg3[%125, %c0_51, %c0_52], %128 {strides = array<i32>} : memref<8x2x64xbf16, #tpu.memory_space<vmem>>, vector<1x2x64xbf16>,
    %129 = vector.extract_strided_slice %122 {offsets = [0, 64], sizes = [2, 64], strides = [1, 1]} : vector<2x128xf32> to vector<2x64xf32>
    %130 = arith.truncf %129 : vector<2x64xf32> to vector<2x64xbf16>
    %131 = arith.index_cast %109 : i32 to index
    %c0_53 = arith.constant 0 : index
    %c0_54 = arith.constant 0 : index
    %132 = vector.load %arg4[%131, %c0_53, %c0_54] : memref<8x2x64xbf16, #tpu.memory_space<vmem>>, vector<1x2x64xbf16>
    %133 = vector.shape_cast %132 : vector<1x2x64xbf16> to vector<2x64xbf16>
    %134 = vector.shape_cast %130 : vector<2x64xbf16> to vector<1x2x64xbf16>
    tpu.vector_store %arg4[%131, %c0_53, %c0_54], %134 {strides = array<i32>} : memref<8x2x64xbf16, #tpu.memory_space<vmem>>, vector<1x2x64xbf16>,
    %c5_i32 = arith.constant 5 : i32
    %c7_i32_55 = arith.constant 7 : i32
    %135 = arith.subi %c7_i32_55, %c5_i32 : i32
    %136 = arith.truncf %122 : vector<2x128xf32> to vector<2x128xbf16>
    %cst_56 = arith.constant dense<0.000000e+00> : vector<2x128xf32>
    %137 = tpu.matmul %136, %0, %cst_56 {dimension_numbers = #tpu.dot_dimension_numbers<[1], [0], [0], [1], [0, 0, 1, 1], [], []>} : vector<2x128xbf16>, vector<128x128xbf16>, vector<2x128xf32> -> vector<2x128xf32>
    %138 = arith.index_cast %c5_i32 : i32 to index
    %c0_57 = arith.constant 0 : index
    %c0_58 = arith.constant 0 : index
    %139 = vector.load %arg1[%138, %c0_57, %c0_58] : memref<8x2x128xbf16, #tpu.memory_space<vmem>>, vector<1x2x128xbf16>
    %140 = vector.shape_cast %139 : vector<1x2x128xbf16> to vector<2x128xbf16>
    %141 = arith.index_cast %135 : i32 to index
    %c0_59 = arith.constant 0 : index
    %c0_60 = arith.constant 0 : index
    %142 = vector.load %arg1[%141, %c0_59, %c0_60] : memref<8x2x128xbf16, #tpu.memory_space<vmem>>, vector<1x2x128xbf16>
    %143 = vector.shape_cast %142 : vector<1x2x128xbf16> to vector<2x128xbf16>
    %144 = arith.select %3, %140, %143 : vector<2x128xi1>, vector<2x128xbf16>
    %145 = arith.extf %144 : vector<2x128xbf16> to vector<2x128xf32>
    %146 = arith.addf %137, %145 : vector<2x128xf32>
    %cst_61 = arith.constant 0.000000e+00 : f32
    %147 = vector.broadcast %cst_61 : f32 to vector<2x128xf32>
    %148 = arith.maximumf %146, %147 : vector<2x128xf32>
    %149 = vector.extract_strided_slice %148 {offsets = [0, 0], sizes = [2, 64], strides = [1, 1]} : vector<2x128xf32> to vector<2x64xf32>
    %150 = arith.truncf %149 : vector<2x64xf32> to vector<2x64xbf16>
    %151 = arith.index_cast %c5_i32 : i32 to index
    %c0_62 = arith.constant 0 : index
    %c0_63 = arith.constant 0 : index
    %152 = vector.load %arg3[%151, %c0_62, %c0_63] : memref<8x2x64xbf16, #tpu.memory_space<vmem>>, vector<1x2x64xbf16>
    %153 = vector.shape_cast %152 : vector<1x2x64xbf16> to vector<2x64xbf16>
    %154 = vector.shape_cast %150 : vector<2x64xbf16> to vector<1x2x64xbf16>
    tpu.vector_store %arg3[%151, %c0_62, %c0_63], %154 {strides = array<i32>} : memref<8x2x64xbf16, #tpu.memory_space<vmem>>, vector<1x2x64xbf16>,
    %155 = vector.extract_strided_slice %148 {offsets = [0, 64], sizes = [2, 64], strides = [1, 1]} : vector<2x128xf32> to vector<2x64xf32>
    %156 = arith.truncf %155 : vector<2x64xf32> to vector<2x64xbf16>
    %157 = arith.index_cast %135 : i32 to index
    %c0_64 = arith.constant 0 : index
    %c0_65 = arith.constant 0 : index
    %158 = vector.load %arg4[%157, %c0_64, %c0_65] : memref<8x2x64xbf16, #tpu.memory_space<vmem>>, vector<1x2x64xbf16>
    %159 = vector.shape_cast %158 : vector<1x2x64xbf16> to vector<2x64xbf16>
    %160 = vector.shape_cast %156 : vector<2x64xbf16> to vector<1x2x64xbf16>
    tpu.vector_store %arg4[%157, %c0_64, %c0_65], %160 {strides = array<i32>} : memref<8x2x64xbf16, #tpu.memory_space<vmem>>, vector<1x2x64xbf16>,
    %c6_i32 = arith.constant 6 : i32
    %c7_i32_66 = arith.constant 7 : i32
    %161 = arith.subi %c7_i32_66, %c6_i32 : i32
    %162 = arith.truncf %148 : vector<2x128xf32> to vector<2x128xbf16>
    %cst_67 = arith.constant dense<0.000000e+00> : vector<2x128xf32>
    %163 = tpu.matmul %162, %0, %cst_67 {dimension_numbers = #tpu.dot_dimension_numbers<[1], [0], [0], [1], [0, 0, 1, 1], [], []>} : vector<2x128xbf16>, vector<128x128xbf16>, vector<2x128xf32> -> vector<2x128xf32>
    %164 = arith.index_cast %c6_i32 : i32 to index
    %c0_68 = arith.constant 0 : index
    %c0_69 = arith.constant 0 : index
    %165 = vector.load %arg1[%164, %c0_68, %c0_69] : memref<8x2x128xbf16, #tpu.memory_space<vmem>>, vector<1x2x128xbf16>
    %166 = vector.shape_cast %165 : vector<1x2x128xbf16> to vector<2x128xbf16>
    %167 = arith.index_cast %161 : i32 to index
    %c0_70 = arith.constant 0 : index
    %c0_71 = arith.constant 0 : index
    %168 = vector.load %arg1[%167, %c0_70, %c0_71] : memref<8x2x128xbf16, #tpu.memory_space<vmem>>, vector<1x2x128xbf16>
    %169 = vector.shape_cast %168 : vector<1x2x128xbf16> to vector<2x128xbf16>
    %170 = arith.select %3, %166, %169 : vector<2x128xi1>, vector<2x128xbf16>
    %171 = arith.extf %170 : vector<2x128xbf16> to vector<2x128xf32>
    %172 = arith.addf %163, %171 : vector<2x128xf32>
    %cst_72 = arith.constant 0.000000e+00 : f32
    %173 = vector.broadcast %cst_72 : f32 to vector<2x128xf32>
    %174 = arith.maximumf %172, %173 : vector<2x128xf32>
    %175 = vector.extract_strided_slice %174 {offsets = [0, 0], sizes = [2, 64], strides = [1, 1]} : vector<2x128xf32> to vector<2x64xf32>
    %176 = arith.truncf %175 : vector<2x64xf32> to vector<2x64xbf16>
    %177 = arith.index_cast %c6_i32 : i32 to index
    %c0_73 = arith.constant 0 : index
    %c0_74 = arith.constant 0 : index
    %178 = vector.load %arg3[%177, %c0_73, %c0_74] : memref<8x2x64xbf16, #tpu.memory_space<vmem>>, vector<1x2x64xbf16>
    %179 = vector.shape_cast %178 : vector<1x2x64xbf16> to vector<2x64xbf16>
    %180 = vector.shape_cast %176 : vector<2x64xbf16> to vector<1x2x64xbf16>
    tpu.vector_store %arg3[%177, %c0_73, %c0_74], %180 {strides = array<i32>} : memref<8x2x64xbf16, #tpu.memory_space<vmem>>, vector<1x2x64xbf16>,
    %181 = vector.extract_strided_slice %174 {offsets = [0, 64], sizes = [2, 64], strides = [1, 1]} : vector<2x128xf32> to vector<2x64xf32>
    %182 = arith.truncf %181 : vector<2x64xf32> to vector<2x64xbf16>
    %183 = arith.index_cast %161 : i32 to index
    %c0_75 = arith.constant 0 : index
    %c0_76 = arith.constant 0 : index
    %184 = vector.load %arg4[%183, %c0_75, %c0_76] : memref<8x2x64xbf16, #tpu.memory_space<vmem>>, vector<1x2x64xbf16>
    %185 = vector.shape_cast %184 : vector<1x2x64xbf16> to vector<2x64xbf16>
    %186 = vector.shape_cast %182 : vector<2x64xbf16> to vector<1x2x64xbf16>
    tpu.vector_store %arg4[%183, %c0_75, %c0_76], %186 {strides = array<i32>} : memref<8x2x64xbf16, #tpu.memory_space<vmem>>, vector<1x2x64xbf16>,
    %c7_i32_77 = arith.constant 7 : i32
    %c7_i32_78 = arith.constant 7 : i32
    %187 = arith.subi %c7_i32_78, %c7_i32_77 : i32
    %188 = arith.truncf %174 : vector<2x128xf32> to vector<2x128xbf16>
    %cst_79 = arith.constant dense<0.000000e+00> : vector<2x128xf32>
    %189 = tpu.matmul %188, %0, %cst_79 {dimension_numbers = #tpu.dot_dimension_numbers<[1], [0], [0], [1], [0, 0, 1, 1], [], []>} : vector<2x128xbf16>, vector<128x128xbf16>, vector<2x128xf32> -> vector<2x128xf32>
    %190 = arith.index_cast %c7_i32_77 : i32 to index
    %c0_80 = arith.constant 0 : index
    %c0_81 = arith.constant 0 : index
    %191 = vector.load %arg1[%190, %c0_80, %c0_81] : memref<8x2x128xbf16, #tpu.memory_space<vmem>>, vector<1x2x128xbf16>
    %192 = vector.shape_cast %191 : vector<1x2x128xbf16> to vector<2x128xbf16>
    %193 = arith.index_cast %187 : i32 to index
    %c0_82 = arith.constant 0 : index
    %c0_83 = arith.constant 0 : index
    %194 = vector.load %arg1[%193, %c0_82, %c0_83] : memref<8x2x128xbf16, #tpu.memory_space<vmem>>, vector<1x2x128xbf16>
    %195 = vector.shape_cast %194 : vector<1x2x128xbf16> to vector<2x128xbf16>
    %196 = arith.select %3, %192, %195 : vector<2x128xi1>, vector<2x128xbf16>
    %197 = arith.extf %196 : vector<2x128xbf16> to vector<2x128xf32>
    %198 = arith.addf %189, %197 : vector<2x128xf32>
    %cst_84 = arith.constant 0.000000e+00 : f32
    %199 = vector.broadcast %cst_84 : f32 to vector<2x128xf32>
    %200 = arith.maximumf %198, %199 : vector<2x128xf32>
    %201 = vector.extract_strided_slice %200 {offsets = [0, 0], sizes = [2, 64], strides = [1, 1]} : vector<2x128xf32> to vector<2x64xf32>
    %202 = arith.truncf %201 : vector<2x64xf32> to vector<2x64xbf16>
    %203 = arith.index_cast %c7_i32_77 : i32 to index
    %c0_85 = arith.constant 0 : index
    %c0_86 = arith.constant 0 : index
    %204 = vector.load %arg3[%203, %c0_85, %c0_86] : memref<8x2x64xbf16, #tpu.memory_space<vmem>>, vector<1x2x64xbf16>
    %205 = vector.shape_cast %204 : vector<1x2x64xbf16> to vector<2x64xbf16>
    %206 = vector.shape_cast %202 : vector<2x64xbf16> to vector<1x2x64xbf16>
    tpu.vector_store %arg3[%203, %c0_85, %c0_86], %206 {strides = array<i32>} : memref<8x2x64xbf16, #tpu.memory_space<vmem>>, vector<1x2x64xbf16>,
    %207 = vector.extract_strided_slice %200 {offsets = [0, 64], sizes = [2, 64], strides = [1, 1]} : vector<2x128xf32> to vector<2x64xf32>
    %208 = arith.truncf %207 : vector<2x64xf32> to vector<2x64xbf16>
    %209 = arith.index_cast %187 : i32 to index
    %c0_87 = arith.constant 0 : index
    %c0_88 = arith.constant 0 : index
    %210 = vector.load %arg4[%209, %c0_87, %c0_88] : memref<8x2x64xbf16, #tpu.memory_space<vmem>>, vector<1x2x64xbf16>
    %211 = vector.shape_cast %210 : vector<1x2x64xbf16> to vector<2x64xbf16>
    %212 = vector.shape_cast %208 : vector<2x64xbf16> to vector<1x2x64xbf16>
    tpu.vector_store %arg4[%209, %c0_87, %c0_88], %212 {strides = array<i32>} : memref<8x2x64xbf16, #tpu.memory_space<vmem>>, vector<1x2x64xbf16>,
    %c8_i32 = arith.constant 8 : i32
    return
  }
  func.func @transform_0(%arg0: i32) -> (i32, i32, i32) {
    %c0_i32 = arith.constant 0 : i32
    %c0_i32_0 = arith.constant 0 : i32
    %c0_i32_1 = arith.constant 0 : i32
    return %c0_i32, %arg0, %c0_i32_0 : i32, i32, i32
  }
  func.func @transform_1(%arg0: i32) -> (i32, i32) {
    %c0_i32 = arith.constant 0 : i32
    %c0_i32_0 = arith.constant 0 : i32
    %c0_i32_1 = arith.constant 0 : i32
    return %c0_i32, %c0_i32_0 : i32, i32
  }
  func.func @transform_2(%arg0: i32) -> (i32, i32, i32) {
    %c0_i32 = arith.constant 0 : i32
    %c0_i32_0 = arith.constant 0 : i32
    %c0_i32_1 = arith.constant 0 : i32
    return %c0_i32, %arg0, %c0_i32_0 : i32, i32, i32
  }
  func.func @transform_3(%arg0: i32) -> (i32, i32, i32) {
    %c0_i32 = arith.constant 0 : i32
    %c0_i32_0 = arith.constant 0 : i32
    %c0_i32_1 = arith.constant 0 : i32
    return %c0_i32, %arg0, %c0_i32_0 : i32, i32, i32
  }
}

module attributes {stable_mosaic.version = 11 : i64} {
  func.func @_dual_proj_kernel(%arg0: i32, %arg1: memref<16x64xbf16, #tpu.memory_space<vmem>>, %arg2: memref<16x64xbf16, #tpu.memory_space<vmem>>, %arg3: memref<64x128xbf16, #tpu.memory_space<vmem>>, %arg4: memref<64x128xbf16, #tpu.memory_space<vmem>>, %arg5: memref<1x128xf32, #tpu.memory_space<vmem>>, %arg6: memref<16x128xbf16, #tpu.memory_space<vmem>>) attributes {dimension_semantics = [#tpu.dimension_semantics<parallel>], iteration_bounds = array<i64: 1>, scalar_prefetch = 0 : i64, scratch_operands = 0 : i64, tpu.core_type = #tpu.core_type<tc>, window_params = [{transform_indices = @transform_0, window_bounds = array<i64: 16, 64>}, {transform_indices = @transform_1, window_bounds = array<i64: 16, 64>}, {pipeline_mode = #tpu.pipeline_mode<synchronous>, transform_indices = @transform_2, window_bounds = array<i64: 64, 128>}, {pipeline_mode = #tpu.pipeline_mode<synchronous>, transform_indices = @transform_3, window_bounds = array<i64: 64, 128>}, {pipeline_mode = #tpu.pipeline_mode<synchronous>, transform_indices = @transform_4, window_bounds = array<i64: 1, 128>}, {transform_indices = @transform_5, window_bounds = array<i64: 16, 128>}]} {
    %c0 = arith.constant 0 : index
    %c0_0 = arith.constant 0 : index
    %0 = vector.load %arg1[%c0, %c0_0] : memref<16x64xbf16, #tpu.memory_space<vmem>>, vector<16x64xbf16>
    %c0_1 = arith.constant 0 : index
    %c0_2 = arith.constant 0 : index
    %1 = vector.load %arg3[%c0_1, %c0_2] : memref<64x128xbf16, #tpu.memory_space<vmem>>, vector<64x128xbf16>
    %cst = arith.constant dense<0.000000e+00> : vector<16x128xf32>
    %2 = tpu.matmul %0, %1, %cst {dimension_numbers = #tpu.dot_dimension_numbers<[1], [0], [0], [1], [0, 0, 1, 1], [], []>} : vector<16x64xbf16>, vector<64x128xbf16>, vector<16x128xf32> -> vector<16x128xf32>
    %c0_3 = arith.constant 0 : index
    %c0_4 = arith.constant 0 : index
    %3 = vector.load %arg2[%c0_3, %c0_4] : memref<16x64xbf16, #tpu.memory_space<vmem>>, vector<16x64xbf16>
    %c0_5 = arith.constant 0 : index
    %c0_6 = arith.constant 0 : index
    %4 = vector.load %arg4[%c0_5, %c0_6] : memref<64x128xbf16, #tpu.memory_space<vmem>>, vector<64x128xbf16>
    %cst_7 = arith.constant dense<0.000000e+00> : vector<16x128xf32>
    %5 = tpu.matmul %3, %4, %cst_7 {dimension_numbers = #tpu.dot_dimension_numbers<[1], [0], [0], [1], [0, 0, 1, 1], [], []>} : vector<16x64xbf16>, vector<64x128xbf16>, vector<16x128xf32> -> vector<16x128xf32>
    %6 = arith.addf %2, %5 : vector<16x128xf32>
    %c0_8 = arith.constant 0 : index
    %c0_9 = arith.constant 0 : index
    %7 = vector.load %arg5[%c0_8, %c0_9] : memref<1x128xf32, #tpu.memory_space<vmem>>, vector<1x128xf32>
    %8 = vector.broadcast %7 : vector<1x128xf32> to vector<16x128xf32>
    %9 = arith.addf %6, %8 : vector<16x128xf32>
    %10 = arith.truncf %9 : vector<16x128xf32> to vector<16x128xbf16>
    %c0_10 = arith.constant 0 : index
    %c0_11 = arith.constant 0 : index
    %11 = vector.load %arg6[%c0_10, %c0_11] : memref<16x128xbf16, #tpu.memory_space<vmem>>, vector<16x128xbf16>
    tpu.vector_store %arg6[%c0_10, %c0_11], %10 {strides = array<i32>} : memref<16x128xbf16, #tpu.memory_space<vmem>>, vector<16x128xbf16>,
    return
  }
  func.func @transform_0(%arg0: i32) -> (i32, i32) {
    %c0_i32 = arith.constant 0 : i32
    %c0_i32_0 = arith.constant 0 : i32
    return %arg0, %c0_i32 : i32, i32
  }
  func.func @transform_1(%arg0: i32) -> (i32, i32) {
    %c0_i32 = arith.constant 0 : i32
    %c0_i32_0 = arith.constant 0 : i32
    return %arg0, %c0_i32 : i32, i32
  }
  func.func @transform_2(%arg0: i32) -> (i32, i32) {
    %c0_i32 = arith.constant 0 : i32
    %c0_i32_0 = arith.constant 0 : i32
    %c0_i32_1 = arith.constant 0 : i32
    return %c0_i32, %c0_i32_0 : i32, i32
  }
  func.func @transform_3(%arg0: i32) -> (i32, i32) {
    %c0_i32 = arith.constant 0 : i32
    %c0_i32_0 = arith.constant 0 : i32
    %c0_i32_1 = arith.constant 0 : i32
    return %c0_i32, %c0_i32_0 : i32, i32
  }
  func.func @transform_4(%arg0: i32) -> (i32, i32) {
    %c0_i32 = arith.constant 0 : i32
    %c0_i32_0 = arith.constant 0 : i32
    %c0_i32_1 = arith.constant 0 : i32
    return %c0_i32, %c0_i32_0 : i32, i32
  }
  func.func @transform_5(%arg0: i32) -> (i32, i32) {
    %c0_i32 = arith.constant 0 : i32
    %c0_i32_0 = arith.constant 0 : i32
    return %arg0, %c0_i32 : i32, i32
  }
}

module attributes {stable_mosaic.version = 11 : i64} {
  func.func @_fc_logsoftmax_kernel(%arg0: i32, %arg1: memref<16x64xbf16, #tpu.memory_space<vmem>>, %arg2: memref<16x64xbf16, #tpu.memory_space<vmem>>, %arg3: memref<64x128xbf16, #tpu.memory_space<vmem>>, %arg4: memref<64x128xbf16, #tpu.memory_space<vmem>>, %arg5: memref<1x128xf32, #tpu.memory_space<vmem>>, %arg6: memref<16x128xf32, #tpu.memory_space<vmem>>) attributes {dimension_semantics = [#tpu.dimension_semantics<parallel>], iteration_bounds = array<i64: 1>, scalar_prefetch = 0 : i64, scratch_operands = 0 : i64, tpu.core_type = #tpu.core_type<tc>, window_params = [{transform_indices = @transform_0, window_bounds = array<i64: 16, 64>}, {transform_indices = @transform_1, window_bounds = array<i64: 16, 64>}, {pipeline_mode = #tpu.pipeline_mode<synchronous>, transform_indices = @transform_2, window_bounds = array<i64: 64, 128>}, {pipeline_mode = #tpu.pipeline_mode<synchronous>, transform_indices = @transform_3, window_bounds = array<i64: 64, 128>}, {pipeline_mode = #tpu.pipeline_mode<synchronous>, transform_indices = @transform_4, window_bounds = array<i64: 1, 128>}, {transform_indices = @transform_5, window_bounds = array<i64: 16, 128>}]} {
    %c0 = arith.constant 0 : index
    %c0_0 = arith.constant 0 : index
    %0 = vector.load %arg1[%c0, %c0_0] : memref<16x64xbf16, #tpu.memory_space<vmem>>, vector<16x64xbf16>
    %c0_1 = arith.constant 0 : index
    %c0_2 = arith.constant 0 : index
    %1 = vector.load %arg3[%c0_1, %c0_2] : memref<64x128xbf16, #tpu.memory_space<vmem>>, vector<64x128xbf16>
    %cst = arith.constant dense<0.000000e+00> : vector<16x128xf32>
    %2 = tpu.matmul %0, %1, %cst {dimension_numbers = #tpu.dot_dimension_numbers<[1], [0], [0], [1], [0, 0, 1, 1], [], []>} : vector<16x64xbf16>, vector<64x128xbf16>, vector<16x128xf32> -> vector<16x128xf32>
    %c0_3 = arith.constant 0 : index
    %c0_4 = arith.constant 0 : index
    %3 = vector.load %arg2[%c0_3, %c0_4] : memref<16x64xbf16, #tpu.memory_space<vmem>>, vector<16x64xbf16>
    %c0_5 = arith.constant 0 : index
    %c0_6 = arith.constant 0 : index
    %4 = vector.load %arg4[%c0_5, %c0_6] : memref<64x128xbf16, #tpu.memory_space<vmem>>, vector<64x128xbf16>
    %cst_7 = arith.constant dense<0.000000e+00> : vector<16x128xf32>
    %5 = tpu.matmul %3, %4, %cst_7 {dimension_numbers = #tpu.dot_dimension_numbers<[1], [0], [0], [1], [0, 0, 1, 1], [], []>} : vector<16x64xbf16>, vector<64x128xbf16>, vector<16x128xf32> -> vector<16x128xf32>
    %6 = arith.addf %2, %5 : vector<16x128xf32>
    %c0_8 = arith.constant 0 : index
    %c0_9 = arith.constant 0 : index
    %7 = vector.load %arg5[%c0_8, %c0_9] : memref<1x128xf32, #tpu.memory_space<vmem>>, vector<1x128xf32>
    %8 = vector.broadcast %7 : vector<1x128xf32> to vector<16x128xf32>
    %9 = arith.addf %6, %8 : vector<16x128xf32>
    %cst_10 = arith.constant dense<0xFF800000> : vector<16xf32>
    %10 = vector.multi_reduction <maximumf>, %9, %cst_10 [1] : vector<16x128xf32> to vector<16xf32>
    %11 = vector.shape_cast %10 : vector<16xf32> to vector<16x1xf32>
    %12 = vector.broadcast %11 : vector<16x1xf32> to vector<16x128xf32>
    %13 = arith.subf %9, %12 : vector<16x128xf32>
    %14 = math.exp %13 : vector<16x128xf32>
    %cst_11 = arith.constant dense<0.000000e+00> : vector<16xf32>
    %15 = vector.multi_reduction <add>, %14, %cst_11 [1] : vector<16x128xf32> to vector<16xf32>
    %16 = vector.shape_cast %15 : vector<16xf32> to vector<16x1xf32>
    %17 = math.log %16 : vector<16x1xf32>
    %18 = vector.broadcast %17 : vector<16x1xf32> to vector<16x128xf32>
    %19 = arith.subf %13, %18 : vector<16x128xf32>
    %c0_12 = arith.constant 0 : index
    %c0_13 = arith.constant 0 : index
    %20 = vector.load %arg6[%c0_12, %c0_13] : memref<16x128xf32, #tpu.memory_space<vmem>>, vector<16x128xf32>
    tpu.vector_store %arg6[%c0_12, %c0_13], %19 {strides = array<i32>} : memref<16x128xf32, #tpu.memory_space<vmem>>, vector<16x128xf32>,
    return
  }
  func.func @transform_0(%arg0: i32) -> (i32, i32) {
    %c0_i32 = arith.constant 0 : i32
    %c0_i32_0 = arith.constant 0 : i32
    return %arg0, %c0_i32 : i32, i32
  }
  func.func @transform_1(%arg0: i32) -> (i32, i32) {
    %c0_i32 = arith.constant 0 : i32
    %c0_i32_0 = arith.constant 0 : i32
    return %arg0, %c0_i32 : i32, i32
  }
  func.func @transform_2(%arg0: i32) -> (i32, i32) {
    %c0_i32 = arith.constant 0 : i32
    %c0_i32_0 = arith.constant 0 : i32
    %c0_i32_1 = arith.constant 0 : i32
    return %c0_i32, %c0_i32_0 : i32, i32
  }
  func.func @transform_3(%arg0: i32) -> (i32, i32) {
    %c0_i32 = arith.constant 0 : i32
    %c0_i32_0 = arith.constant 0 : i32
    %c0_i32_1 = arith.constant 0 : i32
    return %c0_i32, %c0_i32_0 : i32, i32
  }
  func.func @transform_4(%arg0: i32) -> (i32, i32) {
    %c0_i32 = arith.constant 0 : i32
    %c0_i32_0 = arith.constant 0 : i32
    %c0_i32_1 = arith.constant 0 : i32
    return %c0_i32, %c0_i32_0 : i32, i32
  }
  func.func @transform_5(%arg0: i32) -> (i32, i32) {
    %c0_i32 = arith.constant 0 : i32
    %c0_i32_0 = arith.constant 0 : i32
    return %arg0, %c0_i32 : i32, i32
  }
}

</mosaic_0001>

<llo_original>
// kernel: rnn_cnn_forward.5
$region0: #{rnn_cnn_forward.5}
  #allocation0 [shape = 'u32[]', space=smem, size = 0x4, offset = 0x4, fixed_abs, tag = 'smem constant byte address 0x4 - core index']
  #allocation1 [shape = 'u32[144,128]{1,0:T(1,128)}', space=vmem, size = 0x12000, scoped, tag = 'internal scratch']
  %s0 = inlined_call_operand.vmem [shape: bf16[16,48], index: 0, kind: input, shape index: {}]
  %s1 = inlined_call_operand.vmem [shape: bf16[48,128], index: 1, kind: input, shape index: {}]
  %s2 = inlined_call_operand.vmem [shape: f32[1,128], index: 2, kind: input, shape index: {}]
  %s3 = inlined_call_operand.vmem [shape: f32[1,128], index: 3, kind: input, shape index: {}]
  %s4 = inlined_call_operand.vmem [shape: f32[1,128], index: 4, kind: input, shape index: {}]
  %s5 = inlined_call_operand.vmem [shape: bf16[128,64], index: 5, kind: input, shape index: {}]
  %s6 = inlined_call_operand.vmem [shape: f32[1,64], index: 6, kind: input, shape index: {}]
  %s7 = inlined_call_operand.vmem [shape: bf16[64,128], index: 7, kind: input, shape index: {}]
  %s8 = inlined_call_operand.hbm [shape: f32[1,128], index: 8, kind: input, shape index: {}]
  %s9 = inlined_call_operand.vmem [shape: bf16[16,128], index: 9, kind: output, shape index: {}]
  %s10 = sld [smem:[#allocation0]]
  $region50: #{rnn_cnn_forward.5} parent=0
    _
  %s12 = ssub.s32 1, %s10
  %s13 = scalar_select 0, %s12, %s10
  $region1: #{rnn_cnn_forward.5} parent=0
    #allocation2 [shape = 'u8[512]{0}', space=vmem, size = 0x400, scoped, tag = 'input window, operand 8, single buffered']
    #allocation3 [shape = 's32[1]{0}', space=sflag, size = 0x4, scoped, tag = 'scoped memory for rnn_cnn_forward.5']
    %14 = vsyncpa [#allocation3], 0
    // Predicated region
    $region2: #{rnn_cnn_forward.5} parent=1 // pred_check
      _
    $region3: #{rnn_cnn_forward.5} parent=1 // pred_check_branch
      %16 = sbr.rel (0) target = $region5
    $region4: #{rnn_cnn_forward.5} parent=1 // pred_region
      _
    $region5: #{rnn_cnn_forward.5} parent=1 // pred_fallthru
      _
    // Predicated region
    $region6: #{rnn_cnn_forward.5} parent=1 // pred_check
      _
    $region7: #{rnn_cnn_forward.5} parent=1 // pred_check_branch
      %18 = sbr.rel (0) target = $region9
    $region8: #{rnn_cnn_forward.5} parent=1 // pred_region
      _
    $region9: #{rnn_cnn_forward.5} parent=1 // pred_fallthru
      _
    // Predicated region
    $region10: #{rnn_cnn_forward.5} parent=1 // pred_check
      _
    $region11: #{rnn_cnn_forward.5} parent=1 // pred_check_branch
      %20 = sbr.rel (0) target = $region13
    $region12: #{rnn_cnn_forward.5} parent=1 // pred_region
      _
    $region13: #{rnn_cnn_forward.5} parent=1 // pred_fallthru
      _
    // Predicated region
    $region14: #{rnn_cnn_forward.5} parent=1 // pred_check
      _
    $region15: #{rnn_cnn_forward.5} parent=1 // pred_check_branch
      %22 = sbr.rel (0) target = $region17
    $region16: #{rnn_cnn_forward.5} parent=1 // pred_region
      _
    $region17: #{rnn_cnn_forward.5} parent=1 // pred_fallthru
      _
    // Predicated region
    $region18: #{rnn_cnn_forward.5} parent=1 // pred_check
      _
    $region19: #{rnn_cnn_forward.5} parent=1 // pred_check_branch
      %24 = sbr.rel (0) target = $region21
    $region20: #{rnn_cnn_forward.5} parent=1 // pred_region
      _
    $region21: #{rnn_cnn_forward.5} parent=1 // pred_fallthru
      _
    // Predicated region
    $region22: #{rnn_cnn_forward.5} parent=1 // pred_check
      _
    $region23: #{rnn_cnn_forward.5} parent=1 // pred_check_branch
      %26 = sbr.rel (0) target = $region25
    $region24: #{rnn_cnn_forward.5} parent=1 // pred_region
      _
    $region25: #{rnn_cnn_forward.5} parent=1 // pred_fallthru
      _
    // Predicated region
    $region26: #{rnn_cnn_forward.5} parent=1 // pred_check
      _
    $region27: #{rnn_cnn_forward.5} parent=1 // pred_check_branch
      %28 = sbr.rel (0) target = $region29
    $region28: #{rnn_cnn_forward.5} parent=1 // pred_region
      _
    $region29: #{rnn_cnn_forward.5} parent=1 // pred_fallthru
      _
    // Predicated region
    $region30: #{rnn_cnn_forward.5} parent=1 // pred_check
      _
    $region31: #{rnn_cnn_forward.5} parent=1 // pred_check_branch
      %30 = sbr.rel (0) target = $region33
    $region32: #{rnn_cnn_forward.5} parent=1 // pred_region
      _
    $region33: #{rnn_cnn_forward.5} parent=1 // pred_fallthru
      _
    // Predicated region
    $region34: #{rnn_cnn_forward.5} parent=1 // pred_check
      _
    $region35: #{rnn_cnn_forward.5} parent=1 // pred_check_branch
      %32 = sbr.rel (0) target = $region37
    $region36: #{rnn_cnn_forward.5} parent=1 // pred_region
      %s34 = ssub.s32 16, 16
      %35 = vsyncadd [#allocation3], %s34
      %s37 = sshll.u32 [#allocation2], 4
      %s38 = int_to_ptr.vmem [resolvable:$true] %s37
      %40 = dma.hbm_to_vmem [thread:$0]  %s8, 16, %s38, [#allocation3]
    $region37: #{rnn_cnn_forward.5} parent=1 // pred_fallthru
      _
    // Predicated region
    $region38: #{rnn_cnn_forward.5} parent=1 // pred_check
      _
    $region39: #{rnn_cnn_forward.5} parent=1 // pred_check_branch
      %42 = sbr.rel (0) target = $region41
    $region40: #{rnn_cnn_forward.5} parent=1 // pred_region
      %43 = dma.done [#allocation3], 16
    $region41: #{rnn_cnn_forward.5} parent=1 // pred_fallthru
      _
    %v45 = vld [vmem:[%s0] sm:$0xf]
    %v46 = vld [vmem:[%s0 + $0x4] sm:$0xf]
    %v47 = vld [vmem:[%s1] sm:$0xf]
    %v48 = vld [vmem:[%s1 + $0x4] sm:$0xf]
    %v49 = vld [vmem:[%s1 + $0x8] sm:$0xf]
    %v50 = vld [vmem:[%s1 + $0xc] sm:$0xf]
    %v51 = vld [vmem:[%s1 + $0x10] sm:$0xf]
    %v52 = vld [vmem:[%s1 + $0x14] sm:$0xf]
    %v53 = vld [vmem:[%s2] sm:$0x1]
    %v55 = vlaneseq
    %v56 = vshrl.u32 %v55, 7
    %v57 = vsub.s32 0, %v56
    %v58 = vrot.slane %v53, %v57
    %v62 = vunpack.c.l.b16 %v45
    %v63 = vunpack.c.l.b16 %v46
    %v64 = vpack.c.b16 %v63, %v62
    %v71 = vunpack.c.l.b16 %v47
    %v72 = vunpack.c.l.b16 %v48
    %v73 = vunpack.c.l.b16 %v49
    %v74 = vunpack.c.l.b16 %v50
    %v75 = vunpack.c.l.b16 %v51
    %v76 = vunpack.c.l.b16 %v52
    %v77 = vpack.c.b16 %v72, %v71
    %v78 = vpack.c.b16 %v74, %v73
    %v79 = vpack.c.b16 %v76, %v75
    %vm83 = vcmask 392192
    %v85 = vsel %vm83, %v64, 0
    %87 = vmatprep.subr.bf16.mxu0 0
    %88 = vmatpush1.bf16.msra.mxu0 %v77
    %89 = vmatprep.subr.bf16.mxu0 0
    %90 = vmatpush1.bf16.msra.mxu0 %v78
    %91 = vmatprep.subr.bf16.mxu0 0
    %92 = vmatpush1.bf16.msra.mxu0 %v79
    %93 = vmatprep.subr.bf16.mxu0 0
    %94 = vmatpush1.bf16.msra.mxu0 0
    %95 = vmatprep.subr.bf16.mxu0 0
    %96 = vmatpush1.bf16.msra.mxu0 0
    %97 = vmatprep.subr.bf16.mxu0 0
    %98 = vmatpush1.bf16.msra.mxu0 0
    %99 = vmatprep.subr.bf16.mxu0 0
    %100 = vmatpush1.bf16.msra.mxu0 0
    %101 = vmatprep.subr.bf16.mxu0 0
    %102 = vmatpush1.bf16.msra.mxu0 0
    %103 = vmatprep.subr.bf16.mxu0 0
    %104 = vmatpush1.bf16.msra.mxu0 0
    %105 = vmatprep.subr.bf16.mxu0 0
    %106 = vmatpush1.bf16.msra.mxu0 0
    %107 = vmatprep.subr.bf16.mxu0 0
    %108 = vmatpush1.bf16.msra.mxu0 0
    %109 = vmatprep.subr.bf16.mxu0 0
    %110 = vmatpush1.bf16.msra.mxu0 0
    %111 = vmatprep.subr.bf16.mxu0 0
    %112 = vmatpush1.bf16.msra.mxu0 0
    %113 = vmatprep.subr.bf16.mxu0 0
    %114 = vmatpush1.bf16.msra.mxu0 0
    %115 = vmatprep.subr.bf16.mxu0 0
    %116 = vmatpush1.bf16.msra.mxu0 0
    %117 = vmatprep.subr.bf16.mxu0 0
    %118 = vmatpush1.bf16.msra.mxu0 0
    %119 = vmatprep.mubr.bf16.mxu0 0
    %120 = vmatmul.mubr.bf16.gmra.mrb[0].mxu0 %v85
    %v121 = vpop.f32.mrb[0].mxu0
    %v122 = vadd.f32 %v58, %v121
    %v123 = vpop.f32.mrb[0].mxu0
    %v124 = vpop.f32.mrb[0].mxu0
    %v125 = vadd.f32 %v58, %v124
    %v126 = vpop.f32.mrb[0].mxu0
    %127 = vdwg.mxu0
    %v128 = vmax.f32 %v122, 0.0
    %v129 = vmax.f32 %v125, 0.0
    %v130 = vld [vmem:[%s3] sm:$0x1]
    %v132 = vlaneseq
    %v133 = vshrl.u32 %v132, 7
    %v134 = vsub.s32 0, %v133
    %v135 = vrot.slane %v130, %v134
    %v137 = vmul.f32 %v128, %v135
    %v138 = vmul.f32 %v129, %v135
    %v139 = vld [vmem:[%s4] sm:$0x1]
    %v141 = vlaneseq
    %v142 = vshrl.u32 %v141, 7
    %v143 = vsub.s32 0, %v142
    %v144 = vrot.slane %v139, %v143
    %v146 = vadd.f32 %v137, %v144
    %v147 = vadd.f32 %v138, %v144
    %v148 = vpack.c.bf16 %v147, %v146
    %v149 = vld [vmem:[%s5] sm:$0xf]
    %v150 = vld [vmem:[%s5 + $0x4] sm:$0xf]
    %v151 = vld [vmem:[%s5 + $0x8] sm:$0xf]
    %v152 = vld [vmem:[%s5 + $0xc] sm:$0xf]
    %v153 = vld [vmem:[%s5 + $0x10] sm:$0xf]
    %v154 = vld [vmem:[%s5 + $0x14] sm:$0xf]
    %v155 = vld [vmem:[%s5 + $0x18] sm:$0xf]
    %v156 = vld [vmem:[%s5 + $0x1c] sm:$0xf]
    %v157 = vld [vmem:[%s5 + $0x20] sm:$0xf]
    %v158 = vld [vmem:[%s5 + $0x24] sm:$0xf]
    %v159 = vld [vmem:[%s5 + $0x28] sm:$0xf]
    %v160 = vld [vmem:[%s5 + $0x2c] sm:$0xf]
    %v161 = vld [vmem:[%s5 + $0x30] sm:$0xf]
    %v162 = vld [vmem:[%s5 + $0x34] sm:$0xf]
    %v163 = vld [vmem:[%s5 + $0x38] sm:$0xf]
    %v164 = vld [vmem:[%s5 + $0x3c] sm:$0xf]
    %v165 = vld [vmem:[%s6] sm:$0x1]
    %v167 = vlaneseq
    %v168 = vshrl.u32 %v167, 7
    %v169 = vsub.s32 0, %v168
    %v170 = vrot.slane %v165, %v169
    %v188 = vunpack.c.l.b16 %v149
    %v189 = vunpack.c.l.b16 %v150
    %v190 = vunpack.c.l.b16 %v151
    %v191 = vunpack.c.l.b16 %v152
    %v192 = vunpack.c.l.b16 %v153
    %v193 = vunpack.c.l.b16 %v154
    %v194 = vunpack.c.l.b16 %v155
    %v195 = vunpack.c.l.b16 %v156
    %v196 = vunpack.c.l.b16 %v157
    %v197 = vunpack.c.l.b16 %v158
    %v198 = vunpack.c.l.b16 %v159
    %v199 = vunpack.c.l.b16 %v160
    %v200 = vunpack.c.l.b16 %v161
    %v201 = vunpack.c.l.b16 %v162
    %v202 = vunpack.c.l.b16 %v163
    %v203 = vunpack.c.l.b16 %v164
    %v204 = vpack.c.b16 %v189, %v188
    %v205 = vpack.c.b16 %v191, %v190
    %v206 = vpack.c.b16 %v193, %v192
    %v207 = vpack.c.b16 %v195, %v194
    %v208 = vpack.c.b16 %v197, %v196
    %v209 = vpack.c.b16 %v199, %v198
    %v210 = vpack.c.b16 %v201, %v200
    %v211 = vpack.c.b16 %v203, %v202
    %220 = vmatprep.subr.bf16.mxu0 0
    %221 = vmatpush1.bf16.msra.mxu0 %v204
    %222 = vmatprep.subr.bf16.mxu0 0
    %223 = vmatpush1.bf16.msra.mxu0 %v205
    %224 = vmatprep.subr.bf16.mxu0 0
    %225 = vmatpush1.bf16.msra.mxu0 %v206
    %226 = vmatprep.subr.bf16.mxu0 0
    %227 = vmatpush1.bf16.msra.mxu0 %v207
    %228 = vmatprep.subr.bf16.mxu0 0
    %229 = vmatpush1.bf16.msra.mxu0 %v208
    %230 = vmatprep.subr.bf16.mxu0 0
    %231 = vmatpush1.bf16.msra.mxu0 %v209
    %232 = vmatprep.subr.bf16.mxu0 0
    %233 = vmatpush1.bf16.msra.mxu0 %v210
    %234 = vmatprep.subr.bf16.mxu0 0
    %235 = vmatpush1.bf16.msra.mxu0 %v211
    %236 = vmatprep.subr.bf16.mxu0 0
    %237 = vmatpush1.bf16.msra.mxu0 0
    %238 = vmatprep.subr.bf16.mxu0 0
    %239 = vmatpush1.bf16.msra.mxu0 0
    %240 = vmatprep.subr.bf16.mxu0 0
    %241 = vmatpush1.bf16.msra.mxu0 0
    %242 = vmatprep.subr.bf16.mxu0 0
    %243 = vmatpush1.bf16.msra.mxu0 0
    %244 = vmatprep.subr.bf16.mxu0 0
    %245 = vmatpush1.bf16.msra.mxu0 0
    %246 = vmatprep.subr.bf16.mxu0 0
    %247 = vmatpush1.bf16.msra.mxu0 0
    %248 = vmatprep.subr.bf16.mxu0 0
    %249 = vmatpush1.bf16.msra.mxu0 0
    %250 = vmatprep.subr.bf16.mxu0 0
    %251 = vmatpush1.bf16.msra.mxu0 0
    %252 = vmatprep.mubr.bf16.mxu0 0
    %253 = vmatmul.mubr.bf16.gmra.mrb[0].mxu0 %v148
    %v254 = vpop.f32.mrb[0].mxu0
    %v255 = vadd.f32 %v170, %v254
    %v256 = vpop.f32.mrb[0].mxu0
    %v257 = vpop.f32.mrb[0].mxu0
    %v258 = vadd.f32 %v170, %v257
    %v259 = vpop.f32.mrb[0].mxu0
    %260 = vdwg.mxu0
    %v261 = vpack.c.bf16 %v258, %v255
    %v262 = vld [vmem:[%s7] sm:$0xf]
    %v263 = vld [vmem:[%s7 + $0x4] sm:$0xf]
    %v264 = vld [vmem:[%s7 + $0x8] sm:$0xf]
    %v265 = vld [vmem:[%s7 + $0xc] sm:$0xf]
    %v266 = vld [vmem:[%s7 + $0x10] sm:$0xf]
    %v267 = vld [vmem:[%s7 + $0x14] sm:$0xf]
    %v268 = vld [vmem:[%s7 + $0x18] sm:$0xf]
    %v269 = vld [vmem:[%s7 + $0x1c] sm:$0xf]
    %v270 = vld [vmem:[#allocation2] sm:$0x1]
    %v272 = vlaneseq
    %v273 = vshrl.u32 %v272, 7
    %v274 = vsub.s32 0, %v273
    %v275 = vrot.slane %v270, %v274
    %v285 = vunpack.c.l.b16 %v262
    %v286 = vunpack.c.l.b16 %v263
    %v287 = vunpack.c.l.b16 %v264
    %v288 = vunpack.c.l.b16 %v265
    %v289 = vunpack.c.l.b16 %v266
    %v290 = vunpack.c.l.b16 %v267
    %v291 = vunpack.c.l.b16 %v268
    %v292 = vunpack.c.l.b16 %v269
    %v293 = vpack.c.b16 %v286, %v285
    %v294 = vpack.c.b16 %v288, %v287
    %v295 = vpack.c.b16 %v290, %v289
    %v296 = vpack.c.b16 %v292, %v291
    %vm301 = vcmask 523264
    %v303 = vsel %vm301, %v261, 0
    %305 = vmatprep.subr.bf16.mxu0 0
    %306 = vmatpush1.bf16.msra.mxu0 %v293
    %307 = vmatprep.subr.bf16.mxu0 0
    %308 = vmatpush1.bf16.msra.mxu0 %v294
    %309 = vmatprep.subr.bf16.mxu0 0
    %310 = vmatpush1.bf16.msra.mxu0 %v295
    %311 = vmatprep.subr.bf16.mxu0 0
    %312 = vmatpush1.bf16.msra.mxu0 %v296
    %313 = vmatprep.subr.bf16.mxu0 0
    %314 = vmatpush1.bf16.msra.mxu0 0
    %315 = vmatprep.subr.bf16.mxu0 0
    %316 = vmatpush1.bf16.msra.mxu0 0
    %317 = vmatprep.subr.bf16.mxu0 0
    %318 = vmatpush1.bf16.msra.mxu0 0
    %319 = vmatprep.subr.bf16.mxu0 0
    %320 = vmatpush1.bf16.msra.mxu0 0
    %321 = vmatprep.subr.bf16.mxu0 0
    %322 = vmatpush1.bf16.msra.mxu0 0
    %323 = vmatprep.subr.bf16.mxu0 0
    %324 = vmatpush1.bf16.msra.mxu0 0
    %325 = vmatprep.subr.bf16.mxu0 0
    %326 = vmatpush1.bf16.msra.mxu0 0
    %327 = vmatprep.subr.bf16.mxu0 0
    %328 = vmatpush1.bf16.msra.mxu0 0
    %329 = vmatprep.subr.bf16.mxu0 0
    %330 = vmatpush1.bf16.msra.mxu0 0
    %331 = vmatprep.subr.bf16.mxu0 0
    %332 = vmatpush1.bf16.msra.mxu0 0
    %333 = vmatprep.subr.bf16.mxu0 0
    %334 = vmatpush1.bf16.msra.mxu0 0
    %335 = vmatprep.subr.bf16.mxu0 0
    %336 = vmatpush1.bf16.msra.mxu0 0
    %337 = vmatprep.mubr.bf16.mxu0 0
    %338 = vmatmul.mubr.bf16.gmra.mrb[0].mxu0 %v303
    %v339 = vpop.f32.mrb[0].mxu0
    %v340 = vadd.f32 %v275, %v339
    %v341 = vpop.f32.mrb[0].mxu0
    %v342 = vpop.f32.mrb[0].mxu0
    %v343 = vadd.f32 %v275, %v342
    %v344 = vpop.f32.mrb[0].mxu0
    %345 = vdwg.mxu0
    %v346 = vpack.c.bf16 %v343, %v340
    %v348 = vunpack.c.l.b16 %v346
    %v349 = vunpack.c.h.b16 %v346
    %v350 = vpack.c.b16 %v348, %v348
    %v351 = vpack.c.b16 %v349, %v349
    %354 = vst [vmem:[%s9] sm:$0xf] %v350
    %355 = vst [vmem:[%s9 + $0x4] sm:$0xf] %v351
    // Predicated region
    $region42: #{rnn_cnn_forward.5} parent=1 // pred_check
      _
    $region43: #{rnn_cnn_forward.5} parent=1 // pred_check_branch
      %357 = sbr.rel (0) target = $region45
    $region44: #{rnn_cnn_forward.5} parent=1 // pred_region
      _
    $region45: #{rnn_cnn_forward.5} parent=1 // pred_fallthru
      _
    // Predicated region
    $region46: #{rnn_cnn_forward.5} parent=1 // pred_check
      _
    $region47: #{rnn_cnn_forward.5} parent=1 // pred_check_branch
      %359 = sbr.rel (0) target = $region49
    $region48: #{rnn_cnn_forward.5} parent=1 // pred_region
      _
    $region49: #{rnn_cnn_forward.5} parent=1 // pred_fallthru
      _
    %360 = vsyncpa [#allocation3], 1

// kernel: rnn_cnn_forward.6
$region0: #{rnn_cnn_forward.6}
  #allocation0 [shape = 'u32[]', space=smem, size = 0x4, offset = 0x4, fixed_abs, tag = 'smem constant byte address 0x4 - core index']
  #allocation1 [shape = 'u32[144,128]{1,0:T(1,128)}', space=vmem, size = 0x12000, scoped, tag = 'internal scratch']
  %s0 = inlined_call_operand.vmem [shape: bf16[8,2,128], index: 0, kind: input, shape index: {}]
  %s1 = inlined_call_operand.vmem [shape: bf16[128,128], index: 1, kind: input, shape index: {}]
  %s2 = inlined_call_operand.vmem [shape: bf16[8,2,64], index: 2, kind: output, shape index: {0}]
  %s3 = inlined_call_operand.vmem [shape: bf16[8,2,64], index: 3, kind: output, shape index: {1}]
  %4 = xla_tuple %s2, %s3
  %s5 = sld [smem:[#allocation0]]
  $region26: #{rnn_cnn_forward.6} parent=0
    _
  %s7 = ssub.s32 1, %s5
  %s8 = scalar_select 0, %s7, %s5
  // Predicated region
  $region2: #{rnn_cnn_forward.6} parent=0 // pred_check
    _
  $region3: #{rnn_cnn_forward.6} parent=0 // pred_check_branch
    %10 = sbr.rel (0) target = $region5
  $region4: #{rnn_cnn_forward.6} parent=0 // pred_region
    _
  $region5: #{rnn_cnn_forward.6} parent=0 // pred_fallthru
    _
  // Predicated region
  $region6: #{rnn_cnn_forward.6} parent=0 // pred_check
    _
  $region7: #{rnn_cnn_forward.6} parent=0 // pred_check_branch
    %12 = sbr.rel (0) target = $region9
  $region8: #{rnn_cnn_forward.6} parent=0 // pred_region
    _
  $region9: #{rnn_cnn_forward.6} parent=0 // pred_fallthru
    _
  %v15 = vld [vmem:[%s1] sm:$0xf]
  %v16 = vld [vmem:[%s1 + $0x4] sm:$0xf]
  %v17 = vld [vmem:[%s1 + $0x8] sm:$0xf]
  %v18 = vld [vmem:[%s1 + $0xc] sm:$0xf]
  %v19 = vld [vmem:[%s1 + $0x10] sm:$0xf]
  %v20 = vld [vmem:[%s1 + $0x14] sm:$0xf]
  %v21 = vld [vmem:[%s1 + $0x18] sm:$0xf]
  %v22 = vld [vmem:[%s1 + $0x1c] sm:$0xf]
  %v23 = vld [vmem:[%s1 + $0x20] sm:$0xf]
  %v24 = vld [vmem:[%s1 + $0x24] sm:$0xf]
  %v25 = vld [vmem:[%s1 + $0x28] sm:$0xf]
  %v26 = vld [vmem:[%s1 + $0x2c] sm:$0xf]
  %v27 = vld [vmem:[%s1 + $0x30] sm:$0xf]
  %v28 = vld [vmem:[%s1 + $0x34] sm:$0xf]
  %v29 = vld [vmem:[%s1 + $0x38] sm:$0xf]
  %v30 = vld [vmem:[%s1 + $0x3c] sm:$0xf]
  %v31 = vlaneseq
  %v32 = vand.u32 %v31, 127
  %vm33 = vcmp.lt.s32.totalorder %v32, 64
  %v34 = vld [vmem:[%s0] sm:$0x1]
  %s35 = scalar_lea.vmem %s0, 7
  %v36 = vld [vmem:[%s35] sm:$0x1]
  %v37 = vsel %vm33, 1, 0
  %v38 = vpack.c.b16 %v37, %v37
  %vm39 = vcmp.ne.s16.totalorder %v38, 0
  %v40 = vsel %vm39, %v34, %v36
  %v41 = vunpack.c.l.bf16 %v40
  %v58 = vunpack.c.l.b16 %v15
  %v59 = vunpack.c.l.b16 %v16
  %v60 = vunpack.c.l.b16 %v17
  %v61 = vunpack.c.l.b16 %v18
  %v62 = vunpack.c.l.b16 %v19
  %v63 = vunpack.c.l.b16 %v20
  %v64 = vunpack.c.l.b16 %v21
  %v65 = vunpack.c.l.b16 %v22
  %v66 = vunpack.c.l.b16 %v23
  %v67 = vunpack.c.l.b16 %v24
  %v68 = vunpack.c.l.b16 %v25
  %v69 = vunpack.c.l.b16 %v26
  %v70 = vunpack.c.l.b16 %v27
  %v71 = vunpack.c.l.b16 %v28
  %v72 = vunpack.c.l.b16 %v29
  %v73 = vunpack.c.l.b16 %v30
  %v74 = vpack.c.b16 %v59, %v58
  %v75 = vpack.c.b16 %v61, %v60
  %v76 = vpack.c.b16 %v63, %v62
  %v77 = vpack.c.b16 %v65, %v64
  %v78 = vpack.c.b16 %v67, %v66
  %v79 = vpack.c.b16 %v69, %v68
  %v80 = vpack.c.b16 %v71, %v70
  %v81 = vpack.c.b16 %v73, %v72
  %90 = vmatprep.subr.bf16.mxu0 0
  %91 = vmatpush1.bf16.msra.mxu0 %v74
  %92 = vmatprep.subr.bf16.mxu0 0
  %93 = vmatpush1.bf16.msra.mxu0 %v75
  %94 = vmatprep.subr.bf16.mxu0 0
  %95 = vmatpush1.bf16.msra.mxu0 %v76
  %96 = vmatprep.subr.bf16.mxu0 0
  %97 = vmatpush1.bf16.msra.mxu0 %v77
  %98 = vmatprep.subr.bf16.mxu0 0
  %99 = vmatpush1.bf16.msra.mxu0 %v78
  %100 = vmatprep.subr.bf16.mxu0 0
  %101 = vmatpush1.bf16.msra.mxu0 %v79
  %102 = vmatprep.subr.bf16.mxu0 0
  %103 = vmatpush1.bf16.msra.mxu0 %v80
  %104 = vmatprep.subr.bf16.mxu0 0
  %105 = vmatpush1.bf16.msra.mxu0 %v81
  %106 = vmatprep.subr.bf16.mxu0 0
  %107 = vmatpush1.bf16.msra.mxu0 0
  %108 = vmatprep.subr.bf16.mxu0 0
  %109 = vmatpush1.bf16.msra.mxu0 0
  %110 = vmatprep.subr.bf16.mxu0 0
  %111 = vmatpush1.bf16.msra.mxu0 0
  %112 = vmatprep.subr.bf16.mxu0 0
  %113 = vmatpush1.bf16.msra.mxu0 0
  %114 = vmatprep.subr.bf16.mxu0 0
  %115 = vmatpush1.bf16.msra.mxu0 0
  %116 = vmatprep.subr.bf16.mxu0 0
  %117 = vmatpush1.bf16.msra.mxu0 0
  %118 = vmatprep.subr.bf16.mxu0 0
  %119 = vmatpush1.bf16.msra.mxu0 0
  %120 = vmatprep.subr.bf16.mxu0 0
  %121 = vmatpush1.bf16.msra.mxu0 0
  %122 = vmatprep.mubr.bf16.mxu0 0
  %123 = vmatmul.mubr.bf16.gmra.mrb[0].mxu0 0
  %v124 = vpop.f32.mrb[0].mxu0
  %v125 = vadd.f32 %v41, %v124
  %v126 = vpop.f32.mrb[0].mxu0
  %v127 = vpop.f32.mrb[0].mxu0
  %v128 = vpop.f32.mrb[0].mxu0
  %129 = vdwg.mxu0
  %v130 = vmax.f32 %v125, 0.0
  %v131 = vpack.c.bf16 %v130, %v130
  %vm132 = vcmask 516096
  %133 = vst.msk [vmem:[%s2] sm:$0x1] %vm132, %v131
  %v136 = vunpack.c.l.s4 1966171168
  %v137 = vunpack.c.0.s8 %v136
  %v138 = vlaneseq
  %v139 = vshrl.u32 %v138, 7
  %v140 = vsub.s32 %v137, %v139
  %v141 = vrot.slane %v131, %v140
  %v143 = vunpack.c.l.s4 1966171168
  %v144 = vunpack.c.0.s8 %v143
  %v145 = vlaneseq
  %v146 = vshrl.u32 %v145, 7
  %v147 = vsub.s32 %v144, %v146
  %v148 = vrot.slane %v141, %v147
  %149 = vrot.lane.b32.xlu0 %v148, 64
  %v150 = vpop.permute.xlu0 %149
  %s152 = scalar_lea.vmem %s3, 7
  %153 = vst.msk [vmem:[%s152] sm:$0x1] %vm132, %v150
  %s154 = scalar_lea.vmem %s0, 1
  %v155 = vld [vmem:[%s154] sm:$0x1]
  %s156 = scalar_lea.vmem %s0, 6
  %v157 = vld [vmem:[%s156] sm:$0x1]
  %v158 = vsel %vm39, %v155, %v157
  %v159 = vunpack.c.l.bf16 %v158
  %160 = vmatprep.subr.bf16.mxu0 0
  %161 = vmatpush1.bf16.msra.mxu0 %v74
  %162 = vmatprep.subr.bf16.mxu0 0
  %163 = vmatpush1.bf16.msra.mxu0 %v75
  %164 = vmatprep.subr.bf16.mxu0 0
  %165 = vmatpush1.bf16.msra.mxu0 %v76
  %166 = vmatprep.subr.bf16.mxu0 0
  %167 = vmatpush1.bf16.msra.mxu0 %v77
  %168 = vmatprep.subr.bf16.mxu0 0
  %169 = vmatpush1.bf16.msra.mxu0 %v78
  %170 = vmatprep.subr.bf16.mxu0 0
  %171 = vmatpush1.bf16.msra.mxu0 %v79
  %172 = vmatprep.subr.bf16.mxu0 0
  %173 = vmatpush1.bf16.msra.mxu0 %v80
  %174 = vmatprep.subr.bf16.mxu0 0
  %175 = vmatpush1.bf16.msra.mxu0 %v81
  %176 = vmatprep.subr.bf16.mxu0 0
  %177 = vmatpush1.bf16.msra.mxu0 0
  %178 = vmatprep.subr.bf16.mxu0 0
  %179 = vmatpush1.bf16.msra.mxu0 0
  %180 = vmatprep.subr.bf16.mxu0 0
  %181 = vmatpush1.bf16.msra.mxu0 0
  %182 = vmatprep.subr.bf16.mxu0 0
  %183 = vmatpush1.bf16.msra.mxu0 0
  %184 = vmatprep.subr.bf16.mxu0 0
  %185 = vmatpush1.bf16.msra.mxu0 0
  %186 = vmatprep.subr.bf16.mxu0 0
  %187 = vmatpush1.bf16.msra.mxu0 0
  %188 = vmatprep.subr.bf16.mxu0 0
  %189 = vmatpush1.bf16.msra.mxu0 0
  %190 = vmatprep.subr.bf16.mxu0 0
  %191 = vmatpush1.bf16.msra.mxu0 0
  %192 = vmatprep.mubr.bf16.mxu0 0
  %193 = vmatmul.mubr.bf16.gmra.mrb[0].mxu0 %v131
  %v194 = vpop.f32.mrb[0].mxu0
  %v195 = vadd.f32 %v159, %v194
  %v196 = vpop.f32.mrb[0].mxu0
  %v197 = vpop.f32.mrb[0].mxu0
  %v198 = vpop.f32.mrb[0].mxu0
  %199 = vdwg.mxu0
  %v200 = vmax.f32 %v195, 0.0
  %v201 = vpack.c.bf16 %v200, %v200
  %s202 = scalar_lea.vmem %s2, 1
  %203 = vst.msk [vmem:[%s202] sm:$0x1] %vm132, %v201
  %v206 = vunpack.c.l.s4 1966171168
  %v207 = vunpack.c.0.s8 %v206
  %v208 = vlaneseq
  %v209 = vshrl.u32 %v208, 7
  %v210 = vsub.s32 %v207, %v209
  %v211 = vrot.slane %v201, %v210
  %v213 = vunpack.c.l.s4 1966171168
  %v214 = vunpack.c.0.s8 %v213
  %v215 = vlaneseq
  %v216 = vshrl.u32 %v215, 7
  %v217 = vsub.s32 %v214, %v216
  %v218 = vrot.slane %v211, %v217
  %219 = vrot.lane.b32.xlu0 %v218, 64
  %v220 = vpop.permute.xlu0 %219
  %s222 = scalar_lea.vmem %s3, 6
  %223 = vst.msk [vmem:[%s222] sm:$0x1] %vm132, %v220
  %s224 = scalar_lea.vmem %s0, 2
  %v225 = vld [vmem:[%s224] sm:$0x1]
  %s226 = scalar_lea.vmem %s0, 5
  %v227 = vld [vmem:[%s226] sm:$0x1]
  %v228 = vsel %vm39, %v225, %v227
  %v229 = vunpack.c.l.bf16 %v228
  %230 = vmatprep.subr.bf16.mxu0 0
  %231 = vmatpush1.bf16.msra.mxu0 %v74
  %232 = vmatprep.subr.bf16.mxu0 0
  %233 = vmatpush1.bf16.msra.mxu0 %v75
  %234 = vmatprep.subr.bf16.mxu0 0
  %235 = vmatpush1.bf16.msra.mxu0 %v76
  %236 = vmatprep.subr.bf16.mxu0 0
  %237 = vmatpush1.bf16.msra.mxu0 %v77
  %238 = vmatprep.subr.bf16.mxu0 0
  %239 = vmatpush1.bf16.msra.mxu0 %v78
  %240 = vmatprep.subr.bf16.mxu0 0
  %241 = vmatpush1.bf16.msra.mxu0 %v79
  %242 = vmatprep.subr.bf16.mxu0 0
  %243 = vmatpush1.bf16.msra.mxu0 %v80
  %244 = vmatprep.subr.bf16.mxu0 0
  %245 = vmatpush1.bf16.msra.mxu0 %v81
  %246 = vmatprep.subr.bf16.mxu0 0
  %247 = vmatpush1.bf16.msra.mxu0 0
  %248 = vmatprep.subr.bf16.mxu0 0
  %249 = vmatpush1.bf16.msra.mxu0 0
  %250 = vmatprep.subr.bf16.mxu0 0
  %251 = vmatpush1.bf16.msra.mxu0 0
  %252 = vmatprep.subr.bf16.mxu0 0
  %253 = vmatpush1.bf16.msra.mxu0 0
  %254 = vmatprep.subr.bf16.mxu0 0
  %255 = vmatpush1.bf16.msra.mxu0 0
  %256 = vmatprep.subr.bf16.mxu0 0
  %257 = vmatpush1.bf16.msra.mxu0 0
  %258 = vmatprep.subr.bf16.mxu0 0
  %259 = vmatpush1.bf16.msra.mxu0 0
  %260 = vmatprep.subr.bf16.mxu0 0
  %261 = vmatpush1.bf16.msra.mxu0 0
  %262 = vmatprep.mubr.bf16.mxu0 0
  %263 = vmatmul.mubr.bf16.gmra.mrb[0].mxu0 %v201
  %v264 = vpop.f32.mrb[0].mxu0
  %v265 = vadd.f32 %v229, %v264
  %v266 = vpop.f32.mrb[0].mxu0
  %v267 = vpop.f32.mrb[0].mxu0
  %v268 = vpop.f32.mrb[0].mxu0
  %269 = vdwg.mxu0
  %v270 = vmax.f32 %v265, 0.0
  %v271 = vpack.c.bf16 %v270, %v270
  %s272 = scalar_lea.vmem %s2, 2
  %273 = vst.msk [vmem:[%s272] sm:$0x1] %vm132, %v271
  %v276 = vunpack.c.l.s4 1966171168
  %v277 = vunpack.c.0.s8 %v276
  %v278 = vlaneseq
  %v279 = vshrl.u32 %v278, 7
  %v280 = vsub.s32 %v277, %v279
  %v281 = vrot.slane %v271, %v280
  %v283 = vunpack.c.l.s4 1966171168
  %v284 = vunpack.c.0.s8 %v283
  %v285 = vlaneseq
  %v286 = vshrl.u32 %v285, 7
  %v287 = vsub.s32 %v284, %v286
  %v288 = vrot.slane %v281, %v287
  %289 = vrot.lane.b32.xlu0 %v288, 64
  %v290 = vpop.permute.xlu0 %289
  %s292 = scalar_lea.vmem %s3, 5
  %293 = vst.msk [vmem:[%s292] sm:$0x1] %vm132, %v290
  %s294 = scalar_lea.vmem %s0, 3
  %v295 = vld [vmem:[%s294] sm:$0x1]
  %s296 = scalar_lea.vmem %s0, 4
  %v297 = vld [vmem:[%s296] sm:$0x1]
  %v298 = vsel %vm39, %v295, %v297
  %v299 = vunpack.c.l.bf16 %v298
  %300 = vmatprep.subr.bf16.mxu0 0
  %301 = vmatpush1.bf16.msra.mxu0 %v74
  %302 = vmatprep.subr.bf16.mxu0 0
  %303 = vmatpush1.bf16.msra.mxu0 %v75
  %304 = vmatprep.subr.bf16.mxu0 0
  %305 = vmatpush1.bf16.msra.mxu0 %v76
  %306 = vmatprep.subr.bf16.mxu0 0
  %307 = vmatpush1.bf16.msra.mxu0 %v77
  %308 = vmatprep.subr.bf16.mxu0 0
  %309 = vmatpush1.bf16.msra.mxu0 %v78
  %310 = vmatprep.subr.bf16.mxu0 0
  %311 = vmatpush1.bf16.msra.mxu0 %v79
  %312 = vmatprep.subr.bf16.mxu0 0
  %313 = vmatpush1.bf16.msra.mxu0 %v80
  %314 = vmatprep.subr.bf16.mxu0 0
  %315 = vmatpush1.bf16.msra.mxu0 %v81
  %316 = vmatprep.subr.bf16.mxu0 0
  %317 = vmatpush1.bf16.msra.mxu0 0
  %318 = vmatprep.subr.bf16.mxu0 0
  %319 = vmatpush1.bf16.msra.mxu0 0
  %320 = vmatprep.subr.bf16.mxu0 0
  %321 = vmatpush1.bf16.msra.mxu0 0
  %322 = vmatprep.subr.bf16.mxu0 0
  %323 = vmatpush1.bf16.msra.mxu0 0
  %324 = vmatprep.subr.bf16.mxu0 0
  %325 = vmatpush1.bf16.msra.mxu0 0
  %326 = vmatprep.subr.bf16.mxu0 0
  %327 = vmatpush1.bf16.msra.mxu0 0
  %328 = vmatprep.subr.bf16.mxu0 0
  %329 = vmatpush1.bf16.msra.mxu0 0
  %330 = vmatprep.subr.bf16.mxu0 0
  %331 = vmatpush1.bf16.msra.mxu0 0
  %332 = vmatprep.mubr.bf16.mxu0 0
  %333 = vmatmul.mubr.bf16.gmra.mrb[0].mxu0 %v271
  %v334 = vpop.f32.mrb[0].mxu0
  %v335 = vadd.f32 %v299, %v334
  %v336 = vpop.f32.mrb[0].mxu0
  %v337 = vpop.f32.mrb[0].mxu0
  %v338 = vpop.f32.mrb[0].mxu0
  %339 = vdwg.mxu0
  %v340 = vmax.f32 %v335, 0.0
  %v341 = vpack.c.bf16 %v340, %v340
  %s342 = scalar_lea.vmem %s2, 3
  %343 = vst.msk [vmem:[%s342] sm:$0x1] %vm132, %v341
  %v346 = vunpack.c.l.s4 1966171168
  %v347 = vunpack.c.0.s8 %v346
  %v348 = vlaneseq
  %v349 = vshrl.u32 %v348, 7
  %v350 = vsub.s32 %v347, %v349
  %v351 = vrot.slane %v341, %v350
  %v353 = vunpack.c.l.s4 1966171168
  %v354 = vunpack.c.0.s8 %v353
  %v355 = vlaneseq
  %v356 = vshrl.u32 %v355, 7
  %v357 = vsub.s32 %v354, %v356
  %v358 = vrot.slane %v351, %v357
  %359 = vrot.lane.b32.xlu0 %v358, 64
  %v360 = vpop.permute.xlu0 %359
  %s362 = scalar_lea.vmem %s3, 4
  %363 = vst.msk [vmem:[%s362] sm:$0x1] %vm132, %v360
  %v364 = vld [vmem:[%s296] sm:$0x1]
  %v365 = vld [vmem:[%s294] sm:$0x1]
  %v366 = vsel %vm39, %v364, %v365
  %v367 = vunpack.c.l.bf16 %v366
  %368 = vmatprep.subr.bf16.mxu0 0
  %369 = vmatpush1.bf16.msra.mxu0 %v74
  %370 = vmatprep.subr.bf16.mxu0 0
  %371 = vmatpush1.bf16.msra.mxu0 %v75
  %372 = vmatprep.subr.bf16.mxu0 0
  %373 = vmatpush1.bf16.msra.mxu0 %v76
  %374 = vmatprep.subr.bf16.mxu0 0
  %375 = vmatpush1.bf16.msra.mxu0 %v77
  %376 = vmatprep.subr.bf16.mxu0 0
  %377 = vmatpush1.bf16.msra.mxu0 %v78
  %378 = vmatprep.subr.bf16.mxu0 0
  %379 = vmatpush1.bf16.msra.mxu0 %v79
  %380 = vmatprep.subr.bf16.mxu0 0
  %381 = vmatpush1.bf16.msra.mxu0 %v80
  %382 = vmatprep.subr.bf16.mxu0 0
  %383 = vmatpush1.bf16.msra.mxu0 %v81
  %384 = vmatprep.subr.bf16.mxu0 0
  %385 = vmatpush1.bf16.msra.mxu0 0
  %386 = vmatprep.subr.bf16.mxu0 0
  %387 = vmatpush1.bf16.msra.mxu0 0
  %388 = vmatprep.subr.bf16.mxu0 0
  %389 = vmatpush1.bf16.msra.mxu0 0
  %390 = vmatprep.subr.bf16.mxu0 0
  %391 = vmatpush1.bf16.msra.mxu0 0
  %392 = vmatprep.subr.bf16.mxu0 0
  %393 = vmatpush1.bf16.msra.mxu0 0
  %394 = vmatprep.subr.bf16.mxu0 0
  %395 = vmatpush1.bf16.msra.mxu0 0
  %396 = vmatprep.subr.bf16.mxu0 0
  %397 = vmatpush1.bf16.msra.mxu0 0
  %398 = vmatprep.subr.bf16.mxu0 0
  %399 = vmatpush1.bf16.msra.mxu0 0
  %400 = vmatprep.mubr.bf16.mxu0 0
  %401 = vmatmul.mubr.bf16.gmra.mrb[0].mxu0 %v341
  %v402 = vpop.f32.mrb[0].mxu0
  %v403 = vadd.f32 %v367, %v402
  %v404 = vpop.f32.mrb[0].mxu0
  %v405 = vpop.f32.mrb[0].mxu0
  %v406 = vpop.f32.mrb[0].mxu0
  %407 = vdwg.mxu0
  %v408 = vmax.f32 %v403, 0.0
  %v409 = vpack.c.bf16 %v408, %v408
  %s410 = scalar_lea.vmem %s2, 4
  %411 = vst.msk [vmem:[%s410] sm:$0x1] %vm132, %v409
  %v414 = vunpack.c.l.s4 1966171168
  %v415 = vunpack.c.0.s8 %v414
  %v416 = vlaneseq
  %v417 = vshrl.u32 %v416, 7
  %v418 = vsub.s32 %v415, %v417
  %v419 = vrot.slane %v409, %v418
  %v421 = vunpack.c.l.s4 1966171168
  %v422 = vunpack.c.0.s8 %v421
  %v423 = vlaneseq
  %v424 = vshrl.u32 %v423, 7
  %v425 = vsub.s32 %v422, %v424
  %v426 = vrot.slane %v419, %v425
  %427 = vrot.lane.b32.xlu0 %v426, 64
  %v428 = vpop.permute.xlu0 %427
  %s430 = scalar_lea.vmem %s3, 3
  %431 = vst.msk [vmem:[%s430] sm:$0x1] %vm132, %v428
  %v432 = vld [vmem:[%s226] sm:$0x1]
  %v433 = vld [vmem:[%s224] sm:$0x1]
  %v434 = vsel %vm39, %v432, %v433
  %v435 = vunpack.c.l.bf16 %v434
  %436 = vmatprep.subr.bf16.mxu0 0
  %437 = vmatpush1.bf16.msra.mxu0 %v74
  %438 = vmatprep.subr.bf16.mxu0 0
  %439 = vmatpush1.bf16.msra.mxu0 %v75
  %440 = vmatprep.subr.bf16.mxu0 0
  %441 = vmatpush1.bf16.msra.mxu0 %v76
  %442 = vmatprep.subr.bf16.mxu0 0
  %443 = vmatpush1.bf16.msra.mxu0 %v77
  %444 = vmatprep.subr.bf16.mxu0 0
  %445 = vmatpush1.bf16.msra.mxu0 %v78
  %446 = vmatprep.subr.bf16.mxu0 0
  %447 = vmatpush1.bf16.msra.mxu0 %v79
  %448 = vmatprep.subr.bf16.mxu0 0
  %449 = vmatpush1.bf16.msra.mxu0 %v80
  %450 = vmatprep.subr.bf16.mxu0 0
  %451 = vmatpush1.bf16.msra.mxu0 %v81
  %452 = vmatprep.subr.bf16.mxu0 0
  %453 = vmatpush1.bf16.msra.mxu0 0
  %454 = vmatprep.subr.bf16.mxu0 0
  %455 = vmatpush1.bf16.msra.mxu0 0
  %456 = vmatprep.subr.bf16.mxu0 0
  %457 = vmatpush1.bf16.msra.mxu0 0
  %458 = vmatprep.subr.bf16.mxu0 0
  %459 = vmatpush1.bf16.msra.mxu0 0
  %460 = vmatprep.subr.bf16.mxu0 0
  %461 = vmatpush1.bf16.msra.mxu0 0
  %462 = vmatprep.subr.bf16.mxu0 0
  %463 = vmatpush1.bf16.msra.mxu0 0
  %464 = vmatprep.subr.bf16.mxu0 0
  %465 = vmatpush1.bf16.msra.mxu0 0
  %466 = vmatprep.subr.bf16.mxu0 0
  %467 = vmatpush1.bf16.msra.mxu0 0
  %468 = vmatprep.mubr.bf16.mxu0 0
  %469 = vmatmul.mubr.bf16.gmra.mrb[0].mxu0 %v409
  %v470 = vpop.f32.mrb[0].mxu0
  %v471 = vadd.f32 %v435, %v470
  %v472 = vpop.f32.mrb[0].mxu0
  %v473 = vpop.f32.mrb[0].mxu0
  %v474 = vpop.f32.mrb[0].mxu0
  %475 = vdwg.mxu0
  %v476 = vmax.f32 %v471, 0.0
  %v477 = vpack.c.bf16 %v476, %v476
  %s478 = scalar_lea.vmem %s2, 5
  %479 = vst.msk [vmem:[%s478] sm:$0x1] %vm132, %v477
  %v482 = vunpack.c.l.s4 1966171168
  %v483 = vunpack.c.0.s8 %v482
  %v484 = vlaneseq
  %v485 = vshrl.u32 %v484, 7
  %v486 = vsub.s32 %v483, %v485
  %v487 = vrot.slane %v477, %v486
  %v489 = vunpack.c.l.s4 1966171168
  %v490 = vunpack.c.0.s8 %v489
  %v491 = vlaneseq
  %v492 = vshrl.u32 %v491, 7
  %v493 = vsub.s32 %v490, %v492
  %v494 = vrot.slane %v487, %v493
  %495 = vrot.lane.b32.xlu0 %v494, 64
  %v496 = vpop.permute.xlu0 %495
  %s498 = scalar_lea.vmem %s3, 2
  %499 = vst.msk [vmem:[%s498] sm:$0x1] %vm132, %v496
  %v500 = vld [vmem:[%s156] sm:$0x1]
  %v501 = vld [vmem:[%s154] sm:$0x1]
  %v502 = vsel %vm39, %v500, %v501
  %v503 = vunpack.c.l.bf16 %v502
  %504 = vmatprep.subr.bf16.mxu0 0
  %505 = vmatpush1.bf16.msra.mxu0 %v74
  %506 = vmatprep.subr.bf16.mxu0 0
  %507 = vmatpush1.bf16.msra.mxu0 %v75
  %508 = vmatprep.subr.bf16.mxu0 0
  %509 = vmatpush1.bf16.msra.mxu0 %v76
  %510 = vmatprep.subr.bf16.mxu0 0
  %511 = vmatpush1.bf16.msra.mxu0 %v77
  %512 = vmatprep.subr.bf16.mxu0 0
  %513 = vmatpush1.bf16.msra.mxu0 %v78
  %514 = vmatprep.subr.bf16.mxu0 0
  %515 = vmatpush1.bf16.msra.mxu0 %v79
  %516 = vmatprep.subr.bf16.mxu0 0
  %517 = vmatpush1.bf16.msra.mxu0 %v80
  %518 = vmatprep.subr.bf16.mxu0 0
  %519 = vmatpush1.bf16.msra.mxu0 %v81
  %520 = vmatprep.subr.bf16.mxu0 0
  %521 = vmatpush1.bf16.msra.mxu0 0
  %522 = vmatprep.subr.bf16.mxu0 0
  %523 = vmatpush1.bf16.msra.mxu0 0
  %524 = vmatprep.subr.bf16.mxu0 0
  %525 = vmatpush1.bf16.msra.mxu0 0
  %526 = vmatprep.subr.bf16.mxu0 0
  %527 = vmatpush1.bf16.msra.mxu0 0
  %528 = vmatprep.subr.bf16.mxu0 0
  %529 = vmatpush1.bf16.msra.mxu0 0
  %530 = vmatprep.subr.bf16.mxu0 0
  %531 = vmatpush1.bf16.msra.mxu0 0
  %532 = vmatprep.subr.bf16.mxu0 0
  %533 = vmatpush1.bf16.msra.mxu0 0
  %534 = vmatprep.subr.bf16.mxu0 0
  %535 = vmatpush1.bf16.msra.mxu0 0
  %536 = vmatprep.mubr.bf16.mxu0 0
  %537 = vmatmul.mubr.bf16.gmra.mrb[0].mxu0 %v477
  %v538 = vpop.f32.mrb[0].mxu0
  %v539 = vadd.f32 %v503, %v538
  %v540 = vpop.f32.mrb[0].mxu0
  %v541 = vpop.f32.mrb[0].mxu0
  %v542 = vpop.f32.mrb[0].mxu0
  %543 = vdwg.mxu0
  %v544 = vmax.f32 %v539, 0.0
  %v545 = vpack.c.bf16 %v544, %v544
  %s546 = scalar_lea.vmem %s2, 6
  %547 = vst.msk [vmem:[%s546] sm:$0x1] %vm132, %v545
  %v550 = vunpack.c.l.s4 1966171168
  %v551 = vunpack.c.0.s8 %v550
  %v552 = vlaneseq
  %v553 = vshrl.u32 %v552, 7
  %v554 = vsub.s32 %v551, %v553
  %v555 = vrot.slane %v545, %v554
  %v557 = vunpack.c.l.s4 1966171168
  %v558 = vunpack.c.0.s8 %v557
  %v559 = vlaneseq
  %v560 = vshrl.u32 %v559, 7
  %v561 = vsub.s32 %v558, %v560
  %v562 = vrot.slane %v555, %v561
  %563 = vrot.lane.b32.xlu0 %v562, 64
  %v564 = vpop.permute.xlu0 %563
  %s566 = scalar_lea.vmem %s3, 1
  %567 = vst.msk [vmem:[%s566] sm:$0x1] %vm132, %v564
  %v568 = vld [vmem:[%s35] sm:$0x1]
  %v569 = vld [vmem:[%s0] sm:$0x1]
  %v570 = vsel %vm39, %v568, %v569
  %v571 = vunpack.c.l.bf16 %v570
  %572 = vmatprep.subr.bf16.mxu0 0
  %573 = vmatpush1.bf16.msra.mxu0 %v74
  %574 = vmatprep.subr.bf16.mxu0 0
  %575 = vmatpush1.bf16.msra.mxu0 %v75
  %576 = vmatprep.subr.bf16.mxu0 0
  %577 = vmatpush1.bf16.msra.mxu0 %v76
  %578 = vmatprep.subr.bf16.mxu0 0
  %579 = vmatpush1.bf16.msra.mxu0 %v77
  %580 = vmatprep.subr.bf16.mxu0 0
  %581 = vmatpush1.bf16.msra.mxu0 %v78
  %582 = vmatprep.subr.bf16.mxu0 0
  %583 = vmatpush1.bf16.msra.mxu0 %v79
  %584 = vmatprep.subr.bf16.mxu0 0
  %585 = vmatpush1.bf16.msra.mxu0 %v80
  %586 = vmatprep.subr.bf16.mxu0 0
  %587 = vmatpush1.bf16.msra.mxu0 %v81
  %588 = vmatprep.subr.bf16.mxu0 0
  %589 = vmatpush1.bf16.msra.mxu0 0
  %590 = vmatprep.subr.bf16.mxu0 0
  %591 = vmatpush1.bf16.msra.mxu0 0
  %592 = vmatprep.subr.bf16.mxu0 0
  %593 = vmatpush1.bf16.msra.mxu0 0
  %594 = vmatprep.subr.bf16.mxu0 0
  %595 = vmatpush1.bf16.msra.mxu0 0
  %596 = vmatprep.subr.bf16.mxu0 0
  %597 = vmatpush1.bf16.msra.mxu0 0
  %598 = vmatprep.subr.bf16.mxu0 0
  %599 = vmatpush1.bf16.msra.mxu0 0
  %600 = vmatprep.subr.bf16.mxu0 0
  %601 = vmatpush1.bf16.msra.mxu0 0
  %602 = vmatprep.subr.bf16.mxu0 0
  %603 = vmatpush1.bf16.msra.mxu0 0
  %604 = vmatprep.mubr.bf16.mxu0 0
  %605 = vmatmul.mubr.bf16.gmra.mrb[0].mxu0 %v545
  %v606 = vpop.f32.mrb[0].mxu0
  %v607 = vadd.f32 %v571, %v606
  %v608 = vpop.f32.mrb[0].mxu0
  %v609 = vpop.f32.mrb[0].mxu0
  %v610 = vpop.f32.mrb[0].mxu0
  %611 = vdwg.mxu0
  %v612 = vmax.f32 %v607, 0.0
  %v613 = vpack.c.bf16 %v612, %v612
  %s614 = scalar_lea.vmem %s2, 7
  %615 = vst.msk [vmem:[%s614] sm:$0x1] %vm132, %v613
  %v618 = vunpack.c.l.s4 1966171168
  %v619 = vunpack.c.0.s8 %v618
  %v620 = vlaneseq
  %v621 = vshrl.u32 %v620, 7
  %v622 = vsub.s32 %v619, %v621
  %v623 = vrot.slane %v613, %v622
  %v625 = vunpack.c.l.s4 1966171168
  %v626 = vunpack.c.0.s8 %v625
  %v627 = vlaneseq
  %v628 = vshrl.u32 %v627, 7
  %v629 = vsub.s32 %v626, %v628
  %v630 = vrot.slane %v623, %v629
  %631 = vrot.lane.b32.xlu0 %v630, 64
  %v632 = vpop.permute.xlu0 %631
  %634 = vst.msk [vmem:[%s3] sm:$0x1] %vm132, %v632
  // Predicated region
  $region10: #{rnn_cnn_forward.6} parent=0 // pred_check
    _
  $region11: #{rnn_cnn_forward.6} parent=0 // pred_check_branch
    %636 = sbr.rel (0) target = $region13
  $region12: #{rnn_cnn_forward.6} parent=0 // pred_region
    _
  $region13: #{rnn_cnn_forward.6} parent=0 // pred_fallthru
    _
  // Predicated region
  $region14: #{rnn_cnn_forward.6} parent=0 // pred_check
    _
  $region15: #{rnn_cnn_forward.6} parent=0 // pred_check_branch
    %638 = sbr.rel (0) target = $region17
  $region16: #{rnn_cnn_forward.6} parent=0 // pred_region
    _
  $region17: #{rnn_cnn_forward.6} parent=0 // pred_fallthru
    _
  // Predicated region
  $region18: #{rnn_cnn_forward.6} parent=0 // pred_check
    _
  $region19: #{rnn_cnn_forward.6} parent=0 // pred_check_branch
    %640 = sbr.rel (0) target = $region21
  $region20: #{rnn_cnn_forward.6} parent=0 // pred_region
    _
  $region21: #{rnn_cnn_forward.6} parent=0 // pred_fallthru
    _
  // Predicated region
  $region22: #{rnn_cnn_forward.6} parent=0 // pred_check
    _
  $region23: #{rnn_cnn_forward.6} parent=0 // pred_check_branch
    %642 = sbr.rel (0) target = $region25
  $region24: #{rnn_cnn_forward.6} parent=0 // pred_region
    _
  $region25: #{rnn_cnn_forward.6} parent=0 // pred_fallthru
    _

// kernel: rnn_cnn_forward.7
$region0: #{rnn_cnn_forward.7}
  #allocation0 [shape = 'u32[]', space=smem, size = 0x4, offset = 0x4, fixed_abs, tag = 'smem constant byte address 0x4 - core index']
  #allocation1 [shape = 'u32[144,128]{1,0:T(1,128)}', space=vmem, size = 0x12000, scoped, tag = 'internal scratch']
  %s0 = inlined_call_operand.vmem [shape: bf16[16,64], index: 0, kind: input, shape index: {}]
  %s1 = inlined_call_operand.vmem [shape: bf16[16,64], index: 1, kind: input, shape index: {}]
  %s2 = inlined_call_operand.vmem [shape: bf16[64,128], index: 2, kind: input, shape index: {}]
  %s3 = inlined_call_operand.vmem [shape: bf16[64,128], index: 3, kind: input, shape index: {}]
  %s4 = inlined_call_operand.vmem [shape: f32[1,128], index: 4, kind: input, shape index: {}]
  %s5 = inlined_call_operand.vmem [shape: bf16[16,128], index: 5, kind: output, shape index: {}]
  %s6 = sld [smem:[#allocation0]]
  $region30: #{rnn_cnn_forward.7} parent=0
    _
  %s8 = ssub.s32 1, %s6
  %s9 = scalar_select 0, %s8, %s6
  // Predicated region
  $region2: #{rnn_cnn_forward.7} parent=0 // pred_check
    _
  $region3: #{rnn_cnn_forward.7} parent=0 // pred_check_branch
    %11 = sbr.rel (0) target = $region5
  $region4: #{rnn_cnn_forward.7} parent=0 // pred_region
    _
  $region5: #{rnn_cnn_forward.7} parent=0 // pred_fallthru
    _
  // Predicated region
  $region6: #{rnn_cnn_forward.7} parent=0 // pred_check
    _
  $region7: #{rnn_cnn_forward.7} parent=0 // pred_check_branch
    %13 = sbr.rel (0) target = $region9
  $region8: #{rnn_cnn_forward.7} parent=0 // pred_region
    _
  $region9: #{rnn_cnn_forward.7} parent=0 // pred_fallthru
    _
  // Predicated region
  $region10: #{rnn_cnn_forward.7} parent=0 // pred_check
    _
  $region11: #{rnn_cnn_forward.7} parent=0 // pred_check_branch
    %15 = sbr.rel (0) target = $region13
  $region12: #{rnn_cnn_forward.7} parent=0 // pred_region
    _
  $region13: #{rnn_cnn_forward.7} parent=0 // pred_fallthru
    _
  // Predicated region
  $region14: #{rnn_cnn_forward.7} parent=0 // pred_check
    _
  $region15: #{rnn_cnn_forward.7} parent=0 // pred_check_branch
    %17 = sbr.rel (0) target = $region17
  $region16: #{rnn_cnn_forward.7} parent=0 // pred_region
    _
  $region17: #{rnn_cnn_forward.7} parent=0 // pred_fallthru
    _
  // Predicated region
  $region18: #{rnn_cnn_forward.7} parent=0 // pred_check
    _
  $region19: #{rnn_cnn_forward.7} parent=0 // pred_check_branch
    %19 = sbr.rel (0) target = $region21
  $region20: #{rnn_cnn_forward.7} parent=0 // pred_region
    _
  $region21: #{rnn_cnn_forward.7} parent=0 // pred_fallthru
    _
  %v21 = vld [vmem:[%s0] sm:$0xf]
  %v22 = vld [vmem:[%s0 + $0x4] sm:$0xf]
  %v23 = vld [vmem:[%s2] sm:$0xf]
  %v24 = vld [vmem:[%s2 + $0x4] sm:$0xf]
  %v25 = vld [vmem:[%s2 + $0x8] sm:$0xf]
  %v26 = vld [vmem:[%s2 + $0xc] sm:$0xf]
  %v27 = vld [vmem:[%s2 + $0x10] sm:$0xf]
  %v28 = vld [vmem:[%s2 + $0x14] sm:$0xf]
  %v29 = vld [vmem:[%s2 + $0x18] sm:$0xf]
  %v30 = vld [vmem:[%s2 + $0x1c] sm:$0xf]
  %v31 = vld [vmem:[%s1] sm:$0xf]
  %v32 = vld [vmem:[%s1 + $0x4] sm:$0xf]
  %v33 = vld [vmem:[%s3] sm:$0xf]
  %v34 = vld [vmem:[%s3 + $0x4] sm:$0xf]
  %v35 = vld [vmem:[%s3 + $0x8] sm:$0xf]
  %v36 = vld [vmem:[%s3 + $0xc] sm:$0xf]
  %v37 = vld [vmem:[%s3 + $0x10] sm:$0xf]
  %v38 = vld [vmem:[%s3 + $0x14] sm:$0xf]
  %v39 = vld [vmem:[%s3 + $0x18] sm:$0xf]
  %v40 = vld [vmem:[%s3 + $0x1c] sm:$0xf]
  %v43 = vunpack.c.l.b16 %v31
  %v44 = vunpack.c.l.b16 %v32
  %v45 = vpack.c.b16 %v44, %v43
  %v54 = vunpack.c.l.b16 %v33
  %v55 = vunpack.c.l.b16 %v34
  %v56 = vunpack.c.l.b16 %v35
  %v57 = vunpack.c.l.b16 %v36
  %v58 = vunpack.c.l.b16 %v37
  %v59 = vunpack.c.l.b16 %v38
  %v60 = vunpack.c.l.b16 %v39
  %v61 = vunpack.c.l.b16 %v40
  %v62 = vpack.c.b16 %v55, %v54
  %v63 = vpack.c.b16 %v57, %v56
  %v64 = vpack.c.b16 %v59, %v58
  %v65 = vpack.c.b16 %v61, %v60
  %vm70 = vcmask 523264
  %v72 = vsel %vm70, %v45, 0
  %74 = vmatprep.subr.bf16.mxu0 0
  %75 = vmatpush1.bf16.msra.mxu0 %v62
  %76 = vmatprep.subr.bf16.mxu0 0
  %77 = vmatpush1.bf16.msra.mxu0 %v63
  %78 = vmatprep.subr.bf16.mxu0 0
  %79 = vmatpush1.bf16.msra.mxu0 %v64
  %80 = vmatprep.subr.bf16.mxu0 0
  %81 = vmatpush1.bf16.msra.mxu0 %v65
  %82 = vmatprep.subr.bf16.mxu0 0
  %83 = vmatpush1.bf16.msra.mxu0 0
  %84 = vmatprep.subr.bf16.mxu0 0
  %85 = vmatpush1.bf16.msra.mxu0 0
  %86 = vmatprep.subr.bf16.mxu0 0
  %87 = vmatpush1.bf16.msra.mxu0 0
  %88 = vmatprep.subr.bf16.mxu0 0
  %89 = vmatpush1.bf16.msra.mxu0 0
  %90 = vmatprep.subr.bf16.mxu0 0
  %91 = vmatpush1.bf16.msra.mxu0 0
  %92 = vmatprep.subr.bf16.mxu0 0
  %93 = vmatpush1.bf16.msra.mxu0 0
  %94 = vmatprep.subr.bf16.mxu0 0
  %95 = vmatpush1.bf16.msra.mxu0 0
  %96 = vmatprep.subr.bf16.mxu0 0
  %97 = vmatpush1.bf16.msra.mxu0 0
  %98 = vmatprep.subr.bf16.mxu0 0
  %99 = vmatpush1.bf16.msra.mxu0 0
  %100 = vmatprep.subr.bf16.mxu0 0
  %101 = vmatpush1.bf16.msra.mxu0 0
  %102 = vmatprep.subr.bf16.mxu0 0
  %103 = vmatpush1.bf16.msra.mxu0 0
  %104 = vmatprep.subr.bf16.mxu0 0
  %105 = vmatpush1.bf16.msra.mxu0 0
  %106 = vmatprep.mubr.bf16.mxu0 0
  %107 = vmatmul.mubr.bf16.gmra.mrb[0].mxu0 %v72
  %v108 = vpop.f32.mrb[0].mxu0
  %v109 = vadd.f32 0.0, %v108
  %v110 = vpop.f32.mrb[0].mxu0
  %v111 = vpop.f32.mrb[0].mxu0
  %v112 = vadd.f32 0.0, %v111
  %v113 = vpop.f32.mrb[0].mxu0
  %114 = vdwg.mxu0
  %v117 = vunpack.c.l.b16 %v21
  %v118 = vunpack.c.l.b16 %v22
  %v119 = vpack.c.b16 %v118, %v117
  %v128 = vunpack.c.l.b16 %v23
  %v129 = vunpack.c.l.b16 %v24
  %v130 = vunpack.c.l.b16 %v25
  %v131 = vunpack.c.l.b16 %v26
  %v132 = vunpack.c.l.b16 %v27
  %v133 = vunpack.c.l.b16 %v28
  %v134 = vunpack.c.l.b16 %v29
  %v135 = vunpack.c.l.b16 %v30
  %v136 = vpack.c.b16 %v129, %v128
  %v137 = vpack.c.b16 %v131, %v130
  %v138 = vpack.c.b16 %v133, %v132
  %v139 = vpack.c.b16 %v135, %v134
  %v145 = vsel %vm70, %v119, 0
  %147 = vmatprep.subr.bf16.mxu0 0
  %148 = vmatpush1.bf16.msra.mxu0 %v136
  %149 = vmatprep.subr.bf16.mxu0 0
  %150 = vmatpush1.bf16.msra.mxu0 %v137
  %151 = vmatprep.subr.bf16.mxu0 0
  %152 = vmatpush1.bf16.msra.mxu0 %v138
  %153 = vmatprep.subr.bf16.mxu0 0
  %154 = vmatpush1.bf16.msra.mxu0 %v139
  %155 = vmatprep.subr.bf16.mxu0 0
  %156 = vmatpush1.bf16.msra.mxu0 0
  %157 = vmatprep.subr.bf16.mxu0 0
  %158 = vmatpush1.bf16.msra.mxu0 0
  %159 = vmatprep.subr.bf16.mxu0 0
  %160 = vmatpush1.bf16.msra.mxu0 0
  %161 = vmatprep.subr.bf16.mxu0 0
  %162 = vmatpush1.bf16.msra.mxu0 0
  %163 = vmatprep.subr.bf16.mxu0 0
  %164 = vmatpush1.bf16.msra.mxu0 0
  %165 = vmatprep.subr.bf16.mxu0 0
  %166 = vmatpush1.bf16.msra.mxu0 0
  %167 = vmatprep.subr.bf16.mxu0 0
  %168 = vmatpush1.bf16.msra.mxu0 0
  %169 = vmatprep.subr.bf16.mxu0 0
  %170 = vmatpush1.bf16.msra.mxu0 0
  %171 = vmatprep.subr.bf16.mxu0 0
  %172 = vmatpush1.bf16.msra.mxu0 0
  %173 = vmatprep.subr.bf16.mxu0 0
  %174 = vmatpush1.bf16.msra.mxu0 0
  %175 = vmatprep.subr.bf16.mxu0 0
  %176 = vmatpush1.bf16.msra.mxu0 0
  %177 = vmatprep.subr.bf16.mxu0 0
  %178 = vmatpush1.bf16.msra.mxu0 0
  %179 = vmatprep.mubr.bf16.mxu0 0
  %180 = vmatmul.mubr.bf16.gmra.mrb[0].mxu0 %v145
  %v181 = vpop.f32.mrb[0].mxu0
  %v182 = vadd.f32 %v109, %v181
  %v183 = vpop.f32.mrb[0].mxu0
  %v184 = vpop.f32.mrb[0].mxu0
  %v185 = vadd.f32 %v112, %v184
  %v186 = vpop.f32.mrb[0].mxu0
  %187 = vdwg.mxu0
  %v188 = vld [vmem:[%s4] sm:$0x1]
  %v190 = vlaneseq
  %v191 = vshrl.u32 %v190, 7
  %v192 = vsub.s32 0, %v191
  %v193 = vrot.slane %v188, %v192
  %v195 = vadd.f32 %v182, %v193
  %v196 = vadd.f32 %v185, %v193
  %v197 = vpack.c.bf16 %v196, %v195
  %v199 = vunpack.c.l.b16 %v197
  %v200 = vunpack.c.h.b16 %v197
  %v201 = vpack.c.b16 %v199, %v199
  %v202 = vpack.c.b16 %v200, %v200
  %205 = vst [vmem:[%s5] sm:$0xf] %v201
  %206 = vst [vmem:[%s5 + $0x4] sm:$0xf] %v202
  // Predicated region
  $region22: #{rnn_cnn_forward.7} parent=0 // pred_check
    _
  $region23: #{rnn_cnn_forward.7} parent=0 // pred_check_branch
    %208 = sbr.rel (0) target = $region25
  $region24: #{rnn_cnn_forward.7} parent=0 // pred_region
    _
  $region25: #{rnn_cnn_forward.7} parent=0 // pred_fallthru
    _
  // Predicated region
  $region26: #{rnn_cnn_forward.7} parent=0 // pred_check
    _
  $region27: #{rnn_cnn_forward.7} parent=0 // pred_check_branch
    %210 = sbr.rel (0) target = $region29
  $region28: #{rnn_cnn_forward.7} parent=0 // pred_region
    _
  $region29: #{rnn_cnn_forward.7} parent=0 // pred_fallthru
    _

// kernel: rnn_cnn_forward.9
$region0: #{rnn_cnn_forward.9}
  #allocation0 [shape = 'u32[]', space=smem, size = 0x4, offset = 0x4, fixed_abs, tag = 'smem constant byte address 0x4 - core index']
  #allocation1 [shape = 'u32[144,128]{1,0:T(1,128)}', space=vmem, size = 0x12000, scoped, tag = 'internal scratch']
  %s0 = inlined_call_operand.vmem [shape: bf16[16,64], index: 0, kind: input, shape index: {}]
  %s1 = inlined_call_operand.vmem [shape: bf16[16,64], index: 1, kind: input, shape index: {}]
  %s2 = inlined_call_operand.vmem [shape: bf16[64,128], index: 2, kind: input, shape index: {}]
  %s3 = inlined_call_operand.vmem [shape: bf16[64,128], index: 3, kind: input, shape index: {}]
  %s4 = inlined_call_operand.vmem [shape: f32[1,128], index: 4, kind: input, shape index: {}]
  %s5 = inlined_call_operand.vmem [shape: f32[16,128], index: 5, kind: output, shape index: {}]
  %s6 = sld [smem:[#allocation0]]
  $region30: #{rnn_cnn_forward.9} parent=0
    _
  %s8 = ssub.s32 1, %s6
  %s9 = scalar_select 0, %s8, %s6
  // Predicated region
  $region2: #{rnn_cnn_forward.9} parent=0 // pred_check
    _
  $region3: #{rnn_cnn_forward.9} parent=0 // pred_check_branch
    %11 = sbr.rel (0) target = $region5
  $region4: #{rnn_cnn_forward.9} parent=0 // pred_region
    _
  $region5: #{rnn_cnn_forward.9} parent=0 // pred_fallthru
    _
  // Predicated region
  $region6: #{rnn_cnn_forward.9} parent=0 // pred_check
    _
  $region7: #{rnn_cnn_forward.9} parent=0 // pred_check_branch
    %13 = sbr.rel (0) target = $region9
  $region8: #{rnn_cnn_forward.9} parent=0 // pred_region
    _
  $region9: #{rnn_cnn_forward.9} parent=0 // pred_fallthru
    _
  // Predicated region
  $region10: #{rnn_cnn_forward.9} parent=0 // pred_check
    _
  $region11: #{rnn_cnn_forward.9} parent=0 // pred_check_branch
    %15 = sbr.rel (0) target = $region13
  $region12: #{rnn_cnn_forward.9} parent=0 // pred_region
    _
  $region13: #{rnn_cnn_forward.9} parent=0 // pred_fallthru
    _
  // Predicated region
  $region14: #{rnn_cnn_forward.9} parent=0 // pred_check
    _
  $region15: #{rnn_cnn_forward.9} parent=0 // pred_check_branch
    %17 = sbr.rel (0) target = $region17
  $region16: #{rnn_cnn_forward.9} parent=0 // pred_region
    _
  $region17: #{rnn_cnn_forward.9} parent=0 // pred_fallthru
    _
  // Predicated region
  $region18: #{rnn_cnn_forward.9} parent=0 // pred_check
    _
  $region19: #{rnn_cnn_forward.9} parent=0 // pred_check_branch
    %19 = sbr.rel (0) target = $region21
  $region20: #{rnn_cnn_forward.9} parent=0 // pred_region
    _
  $region21: #{rnn_cnn_forward.9} parent=0 // pred_fallthru
    _
  %v21 = vld [vmem:[%s0] sm:$0xf]
  %v22 = vld [vmem:[%s0 + $0x4] sm:$0xf]
  %v23 = vld [vmem:[%s2] sm:$0xf]
  %v24 = vld [vmem:[%s2 + $0x4] sm:$0xf]
  %v25 = vld [vmem:[%s2 + $0x8] sm:$0xf]
  %v26 = vld [vmem:[%s2 + $0xc] sm:$0xf]
  %v27 = vld [vmem:[%s2 + $0x10] sm:$0xf]
  %v28 = vld [vmem:[%s2 + $0x14] sm:$0xf]
  %v29 = vld [vmem:[%s2 + $0x18] sm:$0xf]
  %v30 = vld [vmem:[%s2 + $0x1c] sm:$0xf]
  %v31 = vld [vmem:[%s1] sm:$0xf]
  %v32 = vld [vmem:[%s1 + $0x4] sm:$0xf]
  %v33 = vld [vmem:[%s3] sm:$0xf]
  %v34 = vld [vmem:[%s3 + $0x4] sm:$0xf]
  %v35 = vld [vmem:[%s3 + $0x8] sm:$0xf]
  %v36 = vld [vmem:[%s3 + $0xc] sm:$0xf]
  %v37 = vld [vmem:[%s3 + $0x10] sm:$0xf]
  %v38 = vld [vmem:[%s3 + $0x14] sm:$0xf]
  %v39 = vld [vmem:[%s3 + $0x18] sm:$0xf]
  %v40 = vld [vmem:[%s3 + $0x1c] sm:$0xf]
  %v43 = vunpack.c.l.b16 %v31
  %v44 = vunpack.c.l.b16 %v32
  %v45 = vpack.c.b16 %v44, %v43
  %v54 = vunpack.c.l.b16 %v33
  %v55 = vunpack.c.l.b16 %v34
  %v56 = vunpack.c.l.b16 %v35
  %v57 = vunpack.c.l.b16 %v36
  %v58 = vunpack.c.l.b16 %v37
  %v59 = vunpack.c.l.b16 %v38
  %v60 = vunpack.c.l.b16 %v39
  %v61 = vunpack.c.l.b16 %v40
  %v62 = vpack.c.b16 %v55, %v54
  %v63 = vpack.c.b16 %v57, %v56
  %v64 = vpack.c.b16 %v59, %v58
  %v65 = vpack.c.b16 %v61, %v60
  %vm70 = vcmask 523264
  %v72 = vsel %vm70, %v45, 0
  %74 = vmatprep.subr.bf16.mxu0 0
  %75 = vmatpush1.bf16.msra.mxu0 %v62
  %76 = vmatprep.subr.bf16.mxu0 0
  %77 = vmatpush1.bf16.msra.mxu0 %v63
  %78 = vmatprep.subr.bf16.mxu0 0
  %79 = vmatpush1.bf16.msra.mxu0 %v64
  %80 = vmatprep.subr.bf16.mxu0 0
  %81 = vmatpush1.bf16.msra.mxu0 %v65
  %82 = vmatprep.subr.bf16.mxu0 0
  %83 = vmatpush1.bf16.msra.mxu0 0
  %84 = vmatprep.subr.bf16.mxu0 0
  %85 = vmatpush1.bf16.msra.mxu0 0
  %86 = vmatprep.subr.bf16.mxu0 0
  %87 = vmatpush1.bf16.msra.mxu0 0
  %88 = vmatprep.subr.bf16.mxu0 0
  %89 = vmatpush1.bf16.msra.mxu0 0
  %90 = vmatprep.subr.bf16.mxu0 0
  %91 = vmatpush1.bf16.msra.mxu0 0
  %92 = vmatprep.subr.bf16.mxu0 0
  %93 = vmatpush1.bf16.msra.mxu0 0
  %94 = vmatprep.subr.bf16.mxu0 0
  %95 = vmatpush1.bf16.msra.mxu0 0
  %96 = vmatprep.subr.bf16.mxu0 0
  %97 = vmatpush1.bf16.msra.mxu0 0
  %98 = vmatprep.subr.bf16.mxu0 0
  %99 = vmatpush1.bf16.msra.mxu0 0
  %100 = vmatprep.subr.bf16.mxu0 0
  %101 = vmatpush1.bf16.msra.mxu0 0
  %102 = vmatprep.subr.bf16.mxu0 0
  %103 = vmatpush1.bf16.msra.mxu0 0
  %104 = vmatprep.subr.bf16.mxu0 0
  %105 = vmatpush1.bf16.msra.mxu0 0
  %106 = vmatprep.mubr.bf16.mxu0 0
  %107 = vmatmul.mubr.bf16.gmra.mrb[0].mxu0 %v72
  %v108 = vpop.f32.mrb[0].mxu0
  %v109 = vadd.f32 0.0, %v108
  %v110 = vpop.f32.mrb[0].mxu0
  %v111 = vpop.f32.mrb[0].mxu0
  %v112 = vadd.f32 0.0, %v111
  %v113 = vpop.f32.mrb[0].mxu0
  %114 = vdwg.mxu0
  %v117 = vunpack.c.l.b16 %v21
  %v118 = vunpack.c.l.b16 %v22
  %v119 = vpack.c.b16 %v118, %v117
  %v128 = vunpack.c.l.b16 %v23
  %v129 = vunpack.c.l.b16 %v24
  %v130 = vunpack.c.l.b16 %v25
  %v131 = vunpack.c.l.b16 %v26
  %v132 = vunpack.c.l.b16 %v27
  %v133 = vunpack.c.l.b16 %v28
  %v134 = vunpack.c.l.b16 %v29
  %v135 = vunpack.c.l.b16 %v30
  %v136 = vpack.c.b16 %v129, %v128
  %v137 = vpack.c.b16 %v131, %v130
  %v138 = vpack.c.b16 %v133, %v132
  %v139 = vpack.c.b16 %v135, %v134
  %v145 = vsel %vm70, %v119, 0
  %147 = vmatprep.subr.bf16.mxu0 0
  %148 = vmatpush1.bf16.msra.mxu0 %v136
  %149 = vmatprep.subr.bf16.mxu0 0
  %150 = vmatpush1.bf16.msra.mxu0 %v137
  %151 = vmatprep.subr.bf16.mxu0 0
  %152 = vmatpush1.bf16.msra.mxu0 %v138
  %153 = vmatprep.subr.bf16.mxu0 0
  %154 = vmatpush1.bf16.msra.mxu0 %v139
  %155 = vmatprep.subr.bf16.mxu0 0
  %156 = vmatpush1.bf16.msra.mxu0 0
  %157 = vmatprep.subr.bf16.mxu0 0
  %158 = vmatpush1.bf16.msra.mxu0 0
  %159 = vmatprep.subr.bf16.mxu0 0
  %160 = vmatpush1.bf16.msra.mxu0 0
  %161 = vmatprep.subr.bf16.mxu0 0
  %162 = vmatpush1.bf16.msra.mxu0 0
  %163 = vmatprep.subr.bf16.mxu0 0
  %164 = vmatpush1.bf16.msra.mxu0 0
  %165 = vmatprep.subr.bf16.mxu0 0
  %166 = vmatpush1.bf16.msra.mxu0 0
  %167 = vmatprep.subr.bf16.mxu0 0
  %168 = vmatpush1.bf16.msra.mxu0 0
  %169 = vmatprep.subr.bf16.mxu0 0
  %170 = vmatpush1.bf16.msra.mxu0 0
  %171 = vmatprep.subr.bf16.mxu0 0
  %172 = vmatpush1.bf16.msra.mxu0 0
  %173 = vmatprep.subr.bf16.mxu0 0
  %174 = vmatpush1.bf16.msra.mxu0 0
  %175 = vmatprep.subr.bf16.mxu0 0
  %176 = vmatpush1.bf16.msra.mxu0 0
  %177 = vmatprep.subr.bf16.mxu0 0
  %178 = vmatpush1.bf16.msra.mxu0 0
  %179 = vmatprep.mubr.bf16.mxu0 0
  %180 = vmatmul.mubr.bf16.gmra.mrb[0].mxu0 %v145
  %v181 = vpop.f32.mrb[0].mxu0
  %v182 = vadd.f32 %v109, %v181
  %v183 = vpop.f32.mrb[0].mxu0
  %v184 = vpop.f32.mrb[0].mxu0
  %v185 = vadd.f32 %v112, %v184
  %v186 = vpop.f32.mrb[0].mxu0
  %187 = vdwg.mxu0
  %v188 = vld [vmem:[%s4] sm:$0x1]
  %v190 = vlaneseq
  %v191 = vshrl.u32 %v190, 7
  %v192 = vsub.s32 0, %v191
  %v193 = vrot.slane %v188, %v192
  %v195 = vadd.f32 %v182, %v193
  %v196 = vadd.f32 %v185, %v193
  %197 = vmax.xlane.f32.xlu0 %v195
  %v198 = vpop.xlane.xlu0 %197
  %199 = vmax.xlane.f32.xlu0 %v196
  %v200 = vpop.xlane.xlu0 %199
  %v201 = vsub.f32 %v195, %v198
  %v202 = vsub.f32 %v196, %v200
  %v203 = vmul.f32 %v201, 1.442695
  %v204 = vpow.pop %v203
  %v205 = vmul.f32 %v202, 1.442695
  %v206 = vpow.pop %v205
  %207 = vadd.xlane.f32.xlu0 %v204
  %v208 = vpop.xlane.xlu0 %207
  %209 = vadd.xlane.f32.xlu0 %v206
  %v210 = vpop.xlane.xlu0 %209
  %v211 = vlog2.pop %v208
  %v212 = vmul.f32 %v211, 0.6931472
  %v213 = vlog2.pop %v210
  %v214 = vmul.f32 %v213, 0.6931472
  %v215 = vsub.f32 %v201, %v212
  %v216 = vsub.f32 %v202, %v214
  %217 = vst [vmem:[%s5] sm:$0xff] %v215
  %218 = vst [vmem:[%s5 + $0x8] sm:$0xff] %v216
  // Predicated region
  $region22: #{rnn_cnn_forward.9} parent=0 // pred_check
    _
  $region23: #{rnn_cnn_forward.9} parent=0 // pred_check_branch
    %220 = sbr.rel (0) target = $region25
  $region24: #{rnn_cnn_forward.9} parent=0 // pred_region
    _
  $region25: #{rnn_cnn_forward.9} parent=0 // pred_fallthru
    _
  // Predicated region
  $region26: #{rnn_cnn_forward.9} parent=0 // pred_check
    _
  $region27: #{rnn_cnn_forward.9} parent=0 // pred_check_branch
    %222 = sbr.rel (0) target = $region29
  $region28: #{rnn_cnn_forward.9} parent=0 // pred_region
    _
  $region29: #{rnn_cnn_forward.9} parent=0 // pred_fallthru
    _

</llo_original>
